<compile_context>
chip_gen: v7x
topology: tpu7x:2x2x1
jax: 0.10.0
libtpu: 0.0.40
codegen_flags: <defaults>
</compile_context>

<pallas_src>
import jax
import jax.numpy as jnp
from jax.experimental import pallas as pl
from jax.experimental.pallas import tpu as pltpu

INPUT_SIZE = 768
H1, H2, H3 = 512, 256, 64
NUM_CLASSES = 10          # output_size (not fixed by the reference script)

H3_PAD = 128              # pad 64-wide hidden layer to a full lane width
CLS_PAD = 128             # lane-dense class dimension
TB_MAX = 256              # max batch tile (one MXU M-pass)


def _round_up(n, m):
    return ((n + m - 1) // m) * m


def _mlp_kernel(x_ref,
                w1_ref, b1_ref,
                w2_ref, b2_ref,
                w3_ref, b3_ref,
                w4_ref, b4_ref,
                logits_ref, probs_ref):
    # fc1 + ReLU  (bf16 operands, f32 accumulate)
    h = jnp.dot(x_ref[...], w1_ref[...], preferred_element_type=jnp.float32)
    h = jnp.maximum(h + b1_ref[...], 0.0)
    # fc2 + ReLU
    h = jnp.dot(h.astype(jnp.bfloat16), w2_ref[...],
                preferred_element_type=jnp.float32)
    h = jnp.maximum(h + b2_ref[...], 0.0)
    # fc3 + ReLU  (output padded to 128 lanes; padded lanes are exactly 0)
    h = jnp.dot(h.astype(jnp.bfloat16), w3_ref[...],
                preferred_element_type=jnp.float32)
    h = jnp.maximum(h + b3_ref[...], 0.0)
    # fc4 (logits, lane-dense padded class dim)
    logits = jnp.dot(h.astype(jnp.bfloat16), w4_ref[...],
                     preferred_element_type=jnp.float32) + b4_ref[...]
    logits_ref[...] = logits.astype(logits_ref.dtype)

    # Numerically stable softmax over real classes only: padded lanes -> -inf.
    lane = jax.lax.broadcasted_iota(jnp.int32, logits.shape, 1)
    masked = jnp.where(lane < NUM_CLASSES, logits, -jnp.inf)
    m = jnp.max(masked, axis=1, keepdims=True)
    e = jnp.exp(masked - m)                       # padded lanes -> exp(-inf) = 0
    denom = jnp.sum(e, axis=1, keepdims=True)
    probs_ref[...] = (e * pl.reciprocal(denom, approx=True)).astype(probs_ref.dtype)


def convnet_forward(x, params):
    """x: [B, INPUT_SIZE] float32.
    params: dict name -> (w [in, out] f32, b [1, out] f32).
    Returns (logits, probs), both [B, NUM_CLASSES] float32."""
    B = x.shape[0]
    tb = min(TB_MAX, _round_up(B, 8))       # batch tile, multiple of 8 sublanes
    Bp = _round_up(B, tb)
    grid = (Bp // tb,)

    w1, b1 = params["fc1"]
    w2, b2 = params["fc2"]
    w3, b3 = params["fc3"]
    w4, b4 = params["fc4"]

    # Pad batch to a multiple of tb (zero rows, sliced off at the end).
    x_p = jnp.pad(x, ((0, Bp - B), (0, 0))).astype(jnp.bfloat16)

    # Zero-pad fc3 output dim 64 -> 128 and class dim 10 -> 128 (numerical
    # no-op), cast matmul operands (weights) to bf16; biases stay f32.
    w1b = w1.astype(jnp.bfloat16)
    w2b = w2.astype(jnp.bfloat16)
    w3b = jnp.pad(w3, ((0, 0), (0, H3_PAD - H3))).astype(jnp.bfloat16)
    b3p = jnp.pad(b3, ((0, 0), (0, H3_PAD - H3)))
    w4b = jnp.pad(w4, ((0, H3_PAD - H3), (0, CLS_PAD - NUM_CLASSES))).astype(jnp.bfloat16)
    b4p = jnp.pad(b4, ((0, 0), (0, CLS_PAD - NUM_CLASSES)))

    resident = lambda shape: pl.BlockSpec(shape, lambda i: (0, 0))  # VMEM-resident
    in_specs = [
        pl.BlockSpec((tb, INPUT_SIZE), lambda i: (i, 0)),     # x tile
        resident((INPUT_SIZE, H1)), resident((1, H1)),        # fc1
        resident((H1, H2)), resident((1, H2)),                # fc2
        resident((H2, H3_PAD)), resident((1, H3_PAD)),        # fc3 (padded)
        resident((H3_PAD, CLS_PAD)), resident((1, CLS_PAD)),  # fc4 (padded)
    ]
    out_specs = (
        pl.BlockSpec((tb, CLS_PAD), lambda i: (i, 0)),
        pl.BlockSpec((tb, CLS_PAD), lambda i: (i, 0)),
    )
    out_shapes = (
        jax.ShapeDtypeStruct((Bp, CLS_PAD), jnp.float32),  # logits (padded)
        jax.ShapeDtypeStruct((Bp, CLS_PAD), jnp.float32),  # probs  (padded)
    )

    flops = 2 * Bp * (INPUT_SIZE * H1 + H1 * H2 + H2 * H3_PAD + H3_PAD * CLS_PAD)
    weight_bytes = 2 * (INPUT_SIZE * H1 + H1 * H2 + H2 * H3_PAD + H3_PAD * CLS_PAD)
    bias_bytes = 4 * (H1 + H2 + H3_PAD + CLS_PAD)
    io_bytes = 2 * Bp * INPUT_SIZE + 2 * 4 * Bp * CLS_PAD
    cost = pl.CostEstimate(flops=flops,
                           transcendentals=Bp * CLS_PAD,
                           bytes_accessed=weight_bytes + bias_bytes + io_bytes)

    logits_p, probs_p = pl.pallas_call(
        _mlp_kernel,
        out_shape=out_shapes,
        grid=grid,
        in_specs=in_specs,
        out_specs=out_specs,
        compiler_params=pltpu.CompilerParams(
            dimension_semantics=("parallel",),
            vmem_limit_bytes=32 << 20,
        ),
        cost_estimate=cost,
    )(x_p, w1b, b1, w2b, b2, w3b, b3p, w4b, b4p)

    return logits_p[:B, :NUM_CLASSES], probs_p[:B, :NUM_CLASSES]


def init_params(key):
    """Deterministic init matching PyTorch Linear (weights stored as [in, out])."""
    dims = [(INPUT_SIZE, H1), (H1, H2), (H2, H3), (H3, NUM_CLASSES)]
    names = ["fc1", "fc2", "fc3", "fc4"]
    params = {}
    for name, (fan_in, fan_out) in zip(names, dims):
        key, kw, kb = jax.random.split(key, 3)
        bound = 1.0 / (fan_in ** 0.5)  # same bound PyTorch uses for Linear
        w = jax.random.uniform(kw, (fan_in, fan_out), jnp.float32, -bound, bound)
        b = jax.random.uniform(kb, (1, fan_out), jnp.float32, -bound, bound)
        params[name] = (w, b)
    return params


def _ref_forward(x, params):
    """Pure-JAX reference with the same bf16-operand / f32-accumulate recipe."""
    def lin(h, w, b):
        return jnp.dot(h.astype(jnp.bfloat16), w.astype(jnp.bfloat16),
                       preferred_element_type=jnp.float32) + b
    h = jnp.maximum(lin(x, *params["fc1"]), 0.0)
    h = jnp.maximum(lin(h, *params["fc2"]), 0.0)
    h = jnp.maximum(lin(h, *params["fc3"]), 0.0)
    logits = lin(h, *params["fc4"])
    return logits, jax.nn.softmax(logits, axis=1)


if __name__ == "__main__":
    key = jax.random.PRNGKey(0)
    key, kx = jax.random.split(key)
    B = 8
    x = jax.random.normal(kx, (B, INPUT_SIZE), jnp.float32)
    params = init_params(key)

    fwd = jax.jit(convnet_forward)
    logits, probs = fwd(x, params)
    jax.block_until_ready((logits, probs))

    assert logits.shape == (B, NUM_CLASSES)
    assert probs.shape == (B, NUM_CLASSES)
    # softmax rows sum to 1 (approx reciprocal -> slightly loose tolerance)
    assert jnp.allclose(jnp.sum(probs, axis=1), 1.0, atol=5e-3)

    # compare against a pure-JAX reference with the same dtype recipe
    ref_logits, ref_probs = _ref_forward(x, params)
    assert jnp.allclose(logits, ref_logits, atol=1e-2, rtol=1e-2)
    assert jnp.allclose(probs, ref_probs, atol=1e-2, rtol=1e-2)

    print("KERNEL_OK")
</pallas_src>

<mosaic_0001>
module attributes {stable_mosaic.version = 11 : i64} {
  func.func @_mlp_kernel(%arg0: i32, %arg1: memref<8x768xbf16, #tpu.memory_space<vmem>>, %arg2: memref<768x512xbf16, #tpu.memory_space<vmem>>, %arg3: memref<1x512xf32, #tpu.memory_space<vmem>>, %arg4: memref<512x256xbf16, #tpu.memory_space<vmem>>, %arg5: memref<1x256xf32, #tpu.memory_space<vmem>>, %arg6: memref<256x128xbf16, #tpu.memory_space<vmem>>, %arg7: memref<1x128xf32, #tpu.memory_space<vmem>>, %arg8: memref<128x128xbf16, #tpu.memory_space<vmem>>, %arg9: memref<1x128xf32, #tpu.memory_space<vmem>>, %arg10: memref<8x128xf32, #tpu.memory_space<vmem>>, %arg11: memref<8x128xf32, #tpu.memory_space<vmem>>) attributes {dimension_semantics = [#tpu.dimension_semantics<parallel>], iteration_bounds = array<i64: 1>, scalar_prefetch = 0 : i64, scratch_operands = 0 : i64, tpu.core_type = #tpu.core_type<tc>, window_params = [{transform_indices = @transform_0, window_bounds = array<i64: 8, 768>}, {pipeline_mode = #tpu.pipeline_mode<synchronous>, transform_indices = @transform_1, window_bounds = array<i64: 768, 512>}, {pipeline_mode = #tpu.pipeline_mode<synchronous>, transform_indices = @transform_2, window_bounds = array<i64: 1, 512>}, {pipeline_mode = #tpu.pipeline_mode<synchronous>, transform_indices = @transform_3, window_bounds = array<i64: 512, 256>}, {pipeline_mode = #tpu.pipeline_mode<synchronous>, transform_indices = @transform_4, window_bounds = array<i64: 1, 256>}, {pipeline_mode = #tpu.pipeline_mode<synchronous>, transform_indices = @transform_5, window_bounds = array<i64: 256, 128>}, {pipeline_mode = #tpu.pipeline_mode<synchronous>, transform_indices = @transform_6, window_bounds = array<i64: 1, 128>}, {pipeline_mode = #tpu.pipeline_mode<synchronous>, transform_indices = @transform_7, window_bounds = array<i64: 128, 128>}, {pipeline_mode = #tpu.pipeline_mode<synchronous>, transform_indices = @transform_8, window_bounds = array<i64: 1, 128>}, {transform_indices = @transform_9, window_bounds = array<i64: 8, 128>}, {transform_indices = @transform_10, window_bounds = array<i64: 8, 128>}]} {
    %c0 = arith.constant 0 : index
    %c0_0 = arith.constant 0 : index
    %0 = vector.load %arg1[%c0, %c0_0] : memref<8x768xbf16, #tpu.memory_space<vmem>>, vector<8x768xbf16>
    %c0_1 = arith.constant 0 : index
    %c0_2 = arith.constant 0 : index
    %1 = vector.load %arg2[%c0_1, %c0_2] : memref<768x512xbf16, #tpu.memory_space<vmem>>, vector<768x512xbf16>
    %cst = arith.constant dense<0.000000e+00> : vector<8x512xf32>
    %2 = tpu.matmul %0, %1, %cst {dimension_numbers = #tpu.dot_dimension_numbers<[1], [0], [0], [1], [0, 0, 1, 1], [], []>} : vector<8x768xbf16>, vector<768x512xbf16>, vector<8x512xf32> -> vector<8x512xf32>
    %c0_3 = arith.constant 0 : index
    %c0_4 = arith.constant 0 : index
    %3 = vector.load %arg3[%c0_3, %c0_4] : memref<1x512xf32, #tpu.memory_space<vmem>>, vector<1x512xf32>
    %4 = vector.broadcast %3 : vector<1x512xf32> to vector<8x512xf32>
    %5 = arith.addf %2, %4 : vector<8x512xf32>
    %cst_5 = arith.constant 0.000000e+00 : f32
    %6 = vector.broadcast %cst_5 : f32 to vector<8x512xf32>
    %7 = arith.maximumf %5, %6 : vector<8x512xf32>
    %8 = arith.truncf %7 : vector<8x512xf32> to vector<8x512xbf16>
    %c0_6 = arith.constant 0 : index
    %c0_7 = arith.constant 0 : index
    %9 = vector.load %arg4[%c0_6, %c0_7] : memref<512x256xbf16, #tpu.memory_space<vmem>>, vector<512x256xbf16>
    %cst_8 = arith.constant dense<0.000000e+00> : vector<8x256xf32>
    %10 = tpu.matmul %8, %9, %cst_8 {dimension_numbers = #tpu.dot_dimension_numbers<[1], [0], [0], [1], [0, 0, 1, 1], [], []>} : vector<8x512xbf16>, vector<512x256xbf16>, vector<8x256xf32> -> vector<8x256xf32>
    %c0_9 = arith.constant 0 : index
    %c0_10 = arith.constant 0 : index
    %11 = vector.load %arg5[%c0_9, %c0_10] : memref<1x256xf32, #tpu.memory_space<vmem>>, vector<1x256xf32>
    %12 = vector.broadcast %11 : vector<1x256xf32> to vector<8x256xf32>
    %13 = arith.addf %10, %12 : vector<8x256xf32>
    %cst_11 = arith.constant 0.000000e+00 : f32
    %14 = vector.broadcast %cst_11 : f32 to vector<8x256xf32>
    %15 = arith.maximumf %13, %14 : vector<8x256xf32>
    %16 = arith.truncf %15 : vector<8x256xf32> to vector<8x256xbf16>
    %c0_12 = arith.constant 0 : index
    %c0_13 = arith.constant 0 : index
    %17 = vector.load %arg6[%c0_12, %c0_13] : memref<256x128xbf16, #tpu.memory_space<vmem>>, vector<256x128xbf16>
    %cst_14 = arith.constant dense<0.000000e+00> : vector<8x128xf32>
    %18 = tpu.matmul %16, %17, %cst_14 {dimension_numbers = #tpu.dot_dimension_numbers<[1], [0], [0], [1], [0, 0, 1, 1], [], []>} : vector<8x256xbf16>, vector<256x128xbf16>, vector<8x128xf32> -> vector<8x128xf32>
    %c0_15 = arith.constant 0 : index
    %c0_16 = arith.constant 0 : index
    %19 = vector.load %arg7[%c0_15, %c0_16] : memref<1x128xf32, #tpu.memory_space<vmem>>, vector<1x128xf32>
    %20 = vector.broadcast %19 : vector<1x128xf32> to vector<8x128xf32>
    %21 = arith.addf %18, %20 : vector<8x128xf32>
    %cst_17 = arith.constant 0.000000e+00 : f32
    %22 = vector.broadcast %cst_17 : f32 to vector<8x128xf32>
    %23 = arith.maximumf %21, %22 : vector<8x128xf32>
    %24 = arith.truncf %23 : vector<8x128xf32> to vector<8x128xbf16>
    %c0_18 = arith.constant 0 : index
    %c0_19 = arith.constant 0 : index
    %25 = vector.load %arg8[%c0_18, %c0_19] : memref<128x128xbf16, #tpu.memory_space<vmem>>, vector<128x128xbf16>
    %cst_20 = arith.constant dense<0.000000e+00> : vector<8x128xf32>
    %26 = tpu.matmul %24, %25, %cst_20 {dimension_numbers = #tpu.dot_dimension_numbers<[1], [0], [0], [1], [0, 0, 1, 1], [], []>} : vector<8x128xbf16>, vector<128x128xbf16>, vector<8x128xf32> -> vector<8x128xf32>
    %c0_21 = arith.constant 0 : index
    %c0_22 = arith.constant 0 : index
    %27 = vector.load %arg9[%c0_21, %c0_22] : memref<1x128xf32, #tpu.memory_space<vmem>>, vector<1x128xf32>
    %28 = vector.broadcast %27 : vector<1x128xf32> to vector<8x128xf32>
    %29 = arith.addf %26, %28 : vector<8x128xf32>
    %c0_23 = arith.constant 0 : index
    %c0_24 = arith.constant 0 : index
    %30 = vector.load %arg10[%c0_23, %c0_24] : memref<8x128xf32, #tpu.memory_space<vmem>>, vector<8x128xf32>
    tpu.vector_store %arg10[%c0_23, %c0_24], %29 {strides = array<i32>} : memref<8x128xf32, #tpu.memory_space<vmem>>, vector<8x128xf32>,
    %31 = tpu.iota {dimensions = array<i32: 1>} : vector<8x128xi32>
    %c10_i32 = arith.constant 10 : i32
    %32 = vector.broadcast %c10_i32 : i32 to vector<8x128xi32>
    %33 = arith.cmpi slt, %31, %32 : vector<8x128xi32>
    %cst_25 = arith.constant 0xFF800000 : f32
    %34 = vector.broadcast %cst_25 : f32 to vector<8x128xf32>
    %35 = arith.select %33, %29, %34 : vector<8x128xi1>, vector<8x128xf32>
    %cst_26 = arith.constant dense<0xFF800000> : vector<8xf32>
    %36 = vector.multi_reduction <maximumf>, %35, %cst_26 [1] : vector<8x128xf32> to vector<8xf32>
    %37 = vector.shape_cast %36 : vector<8xf32> to vector<8x1xf32>
    %38 = vector.broadcast %37 : vector<8x1xf32> to vector<8x128xf32>
    %39 = arith.subf %35, %38 : vector<8x128xf32>
    %40 = math.exp %39 : vector<8x128xf32>
    %cst_27 = arith.constant dense<0.000000e+00> : vector<8xf32>
    %41 = vector.multi_reduction <add>, %40, %cst_27 [1] : vector<8x128xf32> to vector<8xf32>
    %42 = vector.shape_cast %41 : vector<8xf32> to vector<8x1xf32>
    %43 = tpu.reciprocal %42 {approx = true} : vector<8x1xf32> -> vector<8x1xf32>
    %44 = vector.broadcast %43 : vector<8x1xf32> to vector<8x128xf32>
    %45 = arith.mulf %40, %44 : vector<8x128xf32>
    %c0_28 = arith.constant 0 : index
    %c0_29 = arith.constant 0 : index
    %46 = vector.load %arg11[%c0_28, %c0_29] : memref<8x128xf32, #tpu.memory_space<vmem>>, vector<8x128xf32>
    tpu.vector_store %arg11[%c0_28, %c0_29], %45 {strides = array<i32>} : memref<8x128xf32, #tpu.memory_space<vmem>>, vector<8x128xf32>,
    return
  }
  func.func @transform_0(%arg0: i32) -> (i32, i32) {
    %c0_i32 = arith.constant 0 : i32
    %c0_i32_0 = arith.constant 0 : i32
    return %arg0, %c0_i32 : i32, i32
  }
  func.func @transform_1(%arg0: i32) -> (i32, i32) {
    %c0_i32 = arith.constant 0 : i32
    %c0_i32_0 = arith.constant 0 : i32
    %c0_i32_1 = arith.constant 0 : i32
    return %c0_i32, %c0_i32_0 : i32, i32
  }
  func.func @transform_2(%arg0: i32) -> (i32, i32) {
    %c0_i32 = arith.constant 0 : i32
    %c0_i32_0 = arith.constant 0 : i32
    %c0_i32_1 = arith.constant 0 : i32
    return %c0_i32, %c0_i32_0 : i32, i32
  }
  func.func @transform_3(%arg0: i32) -> (i32, i32) {
    %c0_i32 = arith.constant 0 : i32
    %c0_i32_0 = arith.constant 0 : i32
    %c0_i32_1 = arith.constant 0 : i32
    return %c0_i32, %c0_i32_0 : i32, i32
  }
  func.func @transform_4(%arg0: i32) -> (i32, i32) {
    %c0_i32 = arith.constant 0 : i32
    %c0_i32_0 = arith.constant 0 : i32
    %c0_i32_1 = arith.constant 0 : i32
    return %c0_i32, %c0_i32_0 : i32, i32
  }
  func.func @transform_5(%arg0: i32) -> (i32, i32) {
    %c0_i32 = arith.constant 0 : i32
    %c0_i32_0 = arith.constant 0 : i32
    %c0_i32_1 = arith.constant 0 : i32
    return %c0_i32, %c0_i32_0 : i32, i32
  }
  func.func @transform_6(%arg0: i32) -> (i32, i32) {
    %c0_i32 = arith.constant 0 : i32
    %c0_i32_0 = arith.constant 0 : i32
    %c0_i32_1 = arith.constant 0 : i32
    return %c0_i32, %c0_i32_0 : i32, i32
  }
  func.func @transform_7(%arg0: i32) -> (i32, i32) {
    %c0_i32 = arith.constant 0 : i32
    %c0_i32_0 = arith.constant 0 : i32
    %c0_i32_1 = arith.constant 0 : i32
    return %c0_i32, %c0_i32_0 : i32, i32
  }
  func.func @transform_8(%arg0: i32) -> (i32, i32) {
    %c0_i32 = arith.constant 0 : i32
    %c0_i32_0 = arith.constant 0 : i32
    %c0_i32_1 = arith.constant 0 : i32
    return %c0_i32, %c0_i32_0 : i32, i32
  }
  func.func @transform_9(%arg0: i32) -> (i32, i32) {
    %c0_i32 = arith.constant 0 : i32
    %c0_i32_0 = arith.constant 0 : i32
    return %arg0, %c0_i32 : i32, i32
  }
  func.func @transform_10(%arg0: i32) -> (i32, i32) {
    %c0_i32 = arith.constant 0 : i32
    %c0_i32_0 = arith.constant 0 : i32
    return %arg0, %c0_i32 : i32, i32
  }
}

</mosaic_0001>

<llo_original>
// kernel: convnet_forward.1
$region0: #{convnet_forward.1}
  #allocation0 [shape = 'u32[]', space=smem, size = 0x4, offset = 0x4, fixed_abs, tag = 'smem constant byte address 0x4 - core index']
  #allocation1 [shape = 'u32[144,128]{1,0:T(1,128)}', space=vmem, size = 0x12000, scoped, tag = 'internal scratch']
  %s0 = inlined_call_operand.vmem [shape: bf16[8,768], index: 0, kind: input, shape index: {}]
  %s1 = inlined_call_operand.vmem [shape: bf16[768,512], index: 1, kind: input, shape index: {}]
  %s2 = inlined_call_operand.vmem [shape: f32[1,512], index: 2, kind: input, shape index: {}]
  %s3 = inlined_call_operand.vmem [shape: bf16[512,256], index: 3, kind: input, shape index: {}]
  %s4 = inlined_call_operand.vmem [shape: f32[1,256], index: 4, kind: input, shape index: {}]
  %s5 = inlined_call_operand.vmem [shape: bf16[256,128], index: 5, kind: input, shape index: {}]
  %s6 = inlined_call_operand.vmem [shape: f32[1,128], index: 6, kind: input, shape index: {}]
  %s7 = inlined_call_operand.vmem [shape: bf16[128,128], index: 7, kind: input, shape index: {}]
  %s8 = inlined_call_operand.vmem [shape: f32[1,128], index: 8, kind: input, shape index: {}]
  %s9 = inlined_call_operand.hbm [shape: f32[8,128], index: 9, kind: output, shape index: {0}]
  %s10 = inlined_call_operand.hbm [shape: f32[8,128], index: 10, kind: output, shape index: {1}]
  %11 = xla_tuple %s9, %s10
  %s12 = sld [smem:[#allocation0]]
  $region54: #{convnet_forward.1} parent=0
    _
  %s14 = ssub.s32 1, %s12
  %s15 = scalar_select 0, %s14, %s12
  $region1: #{convnet_forward.1} parent=0
    #allocation2 [shape = 'u8[4096]{0}', space=vmem, size = 0x1000, scoped, tag = 'output window, operand 0, single buffered']
    #allocation3 [shape = 's32[1]{0}', space=sflag, size = 0x4, scoped, tag = 'scoped memory for convnet_forward.1']
    #allocation4 [shape = 'u8[4096]{0}', space=vmem, size = 0x1000, scoped, tag = 'output window, operand 1, single buffered']
    #allocation5 [shape = 's32[1]{0}', space=sflag, size = 0x4, scoped, tag = 'scoped memory for convnet_forward.1']
    %16 = vsyncpa [#allocation3], 0
    %17 = vsyncpa [#allocation5], 0
    // Predicated region
    $region2: #{convnet_forward.1} parent=1 // pred_check
      _
    $region3: #{convnet_forward.1} parent=1 // pred_check_branch
      %19 = sbr.rel (0) target = $region5
    $region4: #{convnet_forward.1} parent=1 // pred_region
      _
    $region5: #{convnet_forward.1} parent=1 // pred_fallthru
      _
    // Predicated region
    $region6: #{convnet_forward.1} parent=1 // pred_check
      _
    $region7: #{convnet_forward.1} parent=1 // pred_check_branch
      %21 = sbr.rel (0) target = $region9
    $region8: #{convnet_forward.1} parent=1 // pred_region
      _
    $region9: #{convnet_forward.1} parent=1 // pred_fallthru
      _
    // Predicated region
    $region10: #{convnet_forward.1} parent=1 // pred_check
      _
    $region11: #{convnet_forward.1} parent=1 // pred_check_branch
      %23 = sbr.rel (0) target = $region13
    $region12: #{convnet_forward.1} parent=1 // pred_region
      _
    $region13: #{convnet_forward.1} parent=1 // pred_fallthru
      _
    // Predicated region
    $region14: #{convnet_forward.1} parent=1 // pred_check
      _
    $region15: #{convnet_forward.1} parent=1 // pred_check_branch
      %25 = sbr.rel (0) target = $region17
    $region16: #{convnet_forward.1} parent=1 // pred_region
      _
    $region17: #{convnet_forward.1} parent=1 // pred_fallthru
      _
    // Predicated region
    $region18: #{convnet_forward.1} parent=1 // pred_check
      _
    $region19: #{convnet_forward.1} parent=1 // pred_check_branch
      %27 = sbr.rel (0) target = $region21
    $region20: #{convnet_forward.1} parent=1 // pred_region
      _
    $region21: #{convnet_forward.1} parent=1 // pred_fallthru
      _
    // Predicated region
    $region22: #{convnet_forward.1} parent=1 // pred_check
      _
    $region23: #{convnet_forward.1} parent=1 // pred_check_branch
      %29 = sbr.rel (0) target = $region25
    $region24: #{convnet_forward.1} parent=1 // pred_region
      _
    $region25: #{convnet_forward.1} parent=1 // pred_fallthru
      _
    // Predicated region
    $region26: #{convnet_forward.1} parent=1 // pred_check
      _
    $region27: #{convnet_forward.1} parent=1 // pred_check_branch
      %31 = sbr.rel (0) target = $region29
    $region28: #{convnet_forward.1} parent=1 // pred_region
      _
    $region29: #{convnet_forward.1} parent=1 // pred_fallthru
      _
    // Predicated region
    $region30: #{convnet_forward.1} parent=1 // pred_check
      _
    $region31: #{convnet_forward.1} parent=1 // pred_check_branch
      %33 = sbr.rel (0) target = $region33
    $region32: #{convnet_forward.1} parent=1 // pred_region
      _
    $region33: #{convnet_forward.1} parent=1 // pred_fallthru
      _
    // Predicated region
    $region34: #{convnet_forward.1} parent=1 // pred_check
      _
    $region35: #{convnet_forward.1} parent=1 // pred_check_branch
      %35 = sbr.rel (0) target = $region37
    $region36: #{convnet_forward.1} parent=1 // pred_region
      _
    $region37: #{convnet_forward.1} parent=1 // pred_fallthru
      _
    %v37 = vld [vmem:[%s0] sm:$0xff]
    %v38 = vld [vmem:[%s0 + $0x8] sm:$0xff]
    %v39 = vld [vmem:[%s0 + $0x10] sm:$0xff]
    %v40 = vld [vmem:[%s1] sm:$0xff]
    %v41 = vld [vmem:[%s1 + $0x8] sm:$0xff]
    %v42 = vld [vmem:[%s1 + $0x10] sm:$0xff]
    %v43 = vld [vmem:[%s1 + $0x18] sm:$0xff]
    %v44 = vld [vmem:[%s1 + $0x20] sm:$0xff]
    %v45 = vld [vmem:[%s1 + $0x28] sm:$0xff]
    %v46 = vld [vmem:[%s1 + $0x30] sm:$0xff]
    %v47 = vld [vmem:[%s1 + $0x38] sm:$0xff]
    %v48 = vld [vmem:[%s1 + $0x40] sm:$0xff]
    %v49 = vld [vmem:[%s1 + $0x48] sm:$0xff]
    %v50 = vld [vmem:[%s1 + $0x50] sm:$0xff]
    %v51 = vld [vmem:[%s1 + $0x58] sm:$0xff]
    %v52 = vld [vmem:[%s1 + $0x60] sm:$0xff]
    %v53 = vld [vmem:[%s1 + $0x68] sm:$0xff]
    %v54 = vld [vmem:[%s1 + $0x70] sm:$0xff]
    %v55 = vld [vmem:[%s1 + $0x78] sm:$0xff]
    %v56 = vld [vmem:[%s1 + $0x80] sm:$0xff]
    %v57 = vld [vmem:[%s1 + $0x88] sm:$0xff]
    %v58 = vld [vmem:[%s1 + $0x90] sm:$0xff]
    %v59 = vld [vmem:[%s1 + $0x98] sm:$0xff]
    %v60 = vld [vmem:[%s1 + $0xa0] sm:$0xff]
    %v61 = vld [vmem:[%s1 + $0xa8] sm:$0xff]
    %v62 = vld [vmem:[%s1 + $0xb0] sm:$0xff]
    %v63 = vld [vmem:[%s1 + $0xb8] sm:$0xff]
    %v64 = vld [vmem:[%s1 + $0xc0] sm:$0xff]
    %v65 = vld [vmem:[%s1 + $0xc8] sm:$0xff]
    %v66 = vld [vmem:[%s1 + $0xd0] sm:$0xff]
    %v67 = vld [vmem:[%s1 + $0xd8] sm:$0xff]
    %v68 = vld [vmem:[%s1 + $0xe0] sm:$0xff]
    %v69 = vld [vmem:[%s1 + $0xe8] sm:$0xff]
    %v70 = vld [vmem:[%s1 + $0xf0] sm:$0xff]
    %v71 = vld [vmem:[%s1 + $0xf8] sm:$0xff]
    %v72 = vld [vmem:[%s1 + $0x100] sm:$0xff]
    %v73 = vld [vmem:[%s1 + $0x108] sm:$0xff]
    %v74 = vld [vmem:[%s1 + $0x110] sm:$0xff]
    %v75 = vld [vmem:[%s1 + $0x118] sm:$0xff]
    %v76 = vld [vmem:[%s1 + $0x120] sm:$0xff]
    %v77 = vld [vmem:[%s1 + $0x128] sm:$0xff]
    %v78 = vld [vmem:[%s1 + $0x130] sm:$0xff]
    %v79 = vld [vmem:[%s1 + $0x138] sm:$0xff]
    %v80 = vld [vmem:[%s1 + $0x140] sm:$0xff]
    %v81 = vld [vmem:[%s1 + $0x148] sm:$0xff]
    %v82 = vld [vmem:[%s1 + $0x150] sm:$0xff]
    %v83 = vld [vmem:[%s1 + $0x158] sm:$0xff]
    %v84 = vld [vmem:[%s1 + $0x160] sm:$0xff]
    %v85 = vld [vmem:[%s1 + $0x168] sm:$0xff]
    %v86 = vld [vmem:[%s1 + $0x170] sm:$0xff]
    %v87 = vld [vmem:[%s1 + $0x178] sm:$0xff]
    %v88 = vld [vmem:[%s1 + $0x180] sm:$0xff]
    %v89 = vld [vmem:[%s1 + $0x188] sm:$0xff]
    %v90 = vld [vmem:[%s1 + $0x190] sm:$0xff]
    %v91 = vld [vmem:[%s1 + $0x198] sm:$0xff]
    %v92 = vld [vmem:[%s1 + $0x1a0] sm:$0xff]
    %v93 = vld [vmem:[%s1 + $0x1a8] sm:$0xff]
    %v94 = vld [vmem:[%s1 + $0x1b0] sm:$0xff]
    %v95 = vld [vmem:[%s1 + $0x1b8] sm:$0xff]
    %v96 = vld [vmem:[%s1 + $0x1c0] sm:$0xff]
    %v97 = vld [vmem:[%s1 + $0x1c8] sm:$0xff]
    %v98 = vld [vmem:[%s1 + $0x1d0] sm:$0xff]
    %v99 = vld [vmem:[%s1 + $0x1d8] sm:$0xff]
    %v100 = vld [vmem:[%s1 + $0x1e0] sm:$0xff]
    %v101 = vld [vmem:[%s1 + $0x1e8] sm:$0xff]
    %v102 = vld [vmem:[%s1 + $0x1f0] sm:$0xff]
    %v103 = vld [vmem:[%s1 + $0x1f8] sm:$0xff]
    %v104 = vld [vmem:[%s1 + $0x200] sm:$0xff]
    %v105 = vld [vmem:[%s1 + $0x208] sm:$0xff]
    %v106 = vld [vmem:[%s1 + $0x210] sm:$0xff]
    %v107 = vld [vmem:[%s1 + $0x218] sm:$0xff]
    %v108 = vld [vmem:[%s1 + $0x220] sm:$0xff]
    %v109 = vld [vmem:[%s1 + $0x228] sm:$0xff]
    %v110 = vld [vmem:[%s1 + $0x230] sm:$0xff]
    %v111 = vld [vmem:[%s1 + $0x238] sm:$0xff]
    %v112 = vld [vmem:[%s1 + $0x240] sm:$0xff]
    %v113 = vld [vmem:[%s1 + $0x248] sm:$0xff]
    %v114 = vld [vmem:[%s1 + $0x250] sm:$0xff]
    %v115 = vld [vmem:[%s1 + $0x258] sm:$0xff]
    %v116 = vld [vmem:[%s1 + $0x260] sm:$0xff]
    %v117 = vld [vmem:[%s1 + $0x268] sm:$0xff]
    %v118 = vld [vmem:[%s1 + $0x270] sm:$0xff]
    %v119 = vld [vmem:[%s1 + $0x278] sm:$0xff]
    %v120 = vld [vmem:[%s1 + $0x280] sm:$0xff]
    %v121 = vld [vmem:[%s1 + $0x288] sm:$0xff]
    %v122 = vld [vmem:[%s1 + $0x290] sm:$0xff]
    %v123 = vld [vmem:[%s1 + $0x298] sm:$0xff]
    %v124 = vld [vmem:[%s1 + $0x2a0] sm:$0xff]
    %v125 = vld [vmem:[%s1 + $0x2a8] sm:$0xff]
    %v126 = vld [vmem:[%s1 + $0x2b0] sm:$0xff]
    %v127 = vld [vmem:[%s1 + $0x2b8] sm:$0xff]
    %v128 = vld [vmem:[%s1 + $0x2c0] sm:$0xff]
    %v129 = vld [vmem:[%s1 + $0x2c8] sm:$0xff]
    %v130 = vld [vmem:[%s1 + $0x2d0] sm:$0xff]
    %v131 = vld [vmem:[%s1 + $0x2d8] sm:$0xff]
    %v132 = vld [vmem:[%s1 + $0x2e0] sm:$0xff]
    %v133 = vld [vmem:[%s1 + $0x2e8] sm:$0xff]
    %v134 = vld [vmem:[%s1 + $0x2f0] sm:$0xff]
    %v135 = vld [vmem:[%s1 + $0x2f8] sm:$0xff]
    %v136 = vld [vmem:[%s1 + $0x300] sm:$0xff]
    %v137 = vld [vmem:[%s1 + $0x308] sm:$0xff]
    %v138 = vld [vmem:[%s1 + $0x310] sm:$0xff]
    %v139 = vld [vmem:[%s1 + $0x318] sm:$0xff]
    %v140 = vld [vmem:[%s1 + $0x320] sm:$0xff]
    %v141 = vld [vmem:[%s1 + $0x328] sm:$0xff]
    %v142 = vld [vmem:[%s1 + $0x330] sm:$0xff]
    %v143 = vld [vmem:[%s1 + $0x338] sm:$0xff]
    %v144 = vld [vmem:[%s1 + $0x340] sm:$0xff]
    %v145 = vld [vmem:[%s1 + $0x348] sm:$0xff]
    %v146 = vld [vmem:[%s1 + $0x350] sm:$0xff]
    %v147 = vld [vmem:[%s1 + $0x358] sm:$0xff]
    %v148 = vld [vmem:[%s1 + $0x360] sm:$0xff]
    %v149 = vld [vmem:[%s1 + $0x368] sm:$0xff]
    %v150 = vld [vmem:[%s1 + $0x370] sm:$0xff]
    %v151 = vld [vmem:[%s1 + $0x378] sm:$0xff]
    %v152 = vld [vmem:[%s1 + $0x380] sm:$0xff]
    %v153 = vld [vmem:[%s1 + $0x388] sm:$0xff]
    %v154 = vld [vmem:[%s1 + $0x390] sm:$0xff]
    %v155 = vld [vmem:[%s1 + $0x398] sm:$0xff]
    %v156 = vld [vmem:[%s1 + $0x3a0] sm:$0xff]
    %v157 = vld [vmem:[%s1 + $0x3a8] sm:$0xff]
    %v158 = vld [vmem:[%s1 + $0x3b0] sm:$0xff]
    %v159 = vld [vmem:[%s1 + $0x3b8] sm:$0xff]
    %v160 = vld [vmem:[%s1 + $0x3c0] sm:$0xff]
    %v161 = vld [vmem:[%s1 + $0x3c8] sm:$0xff]
    %v162 = vld [vmem:[%s1 + $0x3d0] sm:$0xff]
    %v163 = vld [vmem:[%s1 + $0x3d8] sm:$0xff]
    %v164 = vld [vmem:[%s1 + $0x3e0] sm:$0xff]
    %v165 = vld [vmem:[%s1 + $0x3e8] sm:$0xff]
    %v166 = vld [vmem:[%s1 + $0x3f0] sm:$0xff]
    %v167 = vld [vmem:[%s1 + $0x3f8] sm:$0xff]
    %v168 = vld [vmem:[%s1 + $0x400] sm:$0xff]
    %v169 = vld [vmem:[%s1 + $0x408] sm:$0xff]
    %v170 = vld [vmem:[%s1 + $0x410] sm:$0xff]
    %v171 = vld [vmem:[%s1 + $0x418] sm:$0xff]
    %v172 = vld [vmem:[%s1 + $0x420] sm:$0xff]
    %v173 = vld [vmem:[%s1 + $0x428] sm:$0xff]
    %v174 = vld [vmem:[%s1 + $0x430] sm:$0xff]
    %v175 = vld [vmem:[%s1 + $0x438] sm:$0xff]
    %v176 = vld [vmem:[%s1 + $0x440] sm:$0xff]
    %v177 = vld [vmem:[%s1 + $0x448] sm:$0xff]
    %v178 = vld [vmem:[%s1 + $0x450] sm:$0xff]
    %v179 = vld [vmem:[%s1 + $0x458] sm:$0xff]
    %v180 = vld [vmem:[%s1 + $0x460] sm:$0xff]
    %v181 = vld [vmem:[%s1 + $0x468] sm:$0xff]
    %v182 = vld [vmem:[%s1 + $0x470] sm:$0xff]
    %v183 = vld [vmem:[%s1 + $0x478] sm:$0xff]
    %v184 = vld [vmem:[%s1 + $0x480] sm:$0xff]
    %v185 = vld [vmem:[%s1 + $0x488] sm:$0xff]
    %v186 = vld [vmem:[%s1 + $0x490] sm:$0xff]
    %v187 = vld [vmem:[%s1 + $0x498] sm:$0xff]
    %v188 = vld [vmem:[%s1 + $0x4a0] sm:$0xff]
    %v189 = vld [vmem:[%s1 + $0x4a8] sm:$0xff]
    %v190 = vld [vmem:[%s1 + $0x4b0] sm:$0xff]
    %v191 = vld [vmem:[%s1 + $0x4b8] sm:$0xff]
    %v192 = vld [vmem:[%s1 + $0x4c0] sm:$0xff]
    %v193 = vld [vmem:[%s1 + $0x4c8] sm:$0xff]
    %v194 = vld [vmem:[%s1 + $0x4d0] sm:$0xff]
    %v195 = vld [vmem:[%s1 + $0x4d8] sm:$0xff]
    %v196 = vld [vmem:[%s1 + $0x4e0] sm:$0xff]
    %v197 = vld [vmem:[%s1 + $0x4e8] sm:$0xff]
    %v198 = vld [vmem:[%s1 + $0x4f0] sm:$0xff]
    %v199 = vld [vmem:[%s1 + $0x4f8] sm:$0xff]
    %v200 = vld [vmem:[%s1 + $0x500] sm:$0xff]
    %v201 = vld [vmem:[%s1 + $0x508] sm:$0xff]
    %v202 = vld [vmem:[%s1 + $0x510] sm:$0xff]
    %v203 = vld [vmem:[%s1 + $0x518] sm:$0xff]
    %v204 = vld [vmem:[%s1 + $0x520] sm:$0xff]
    %v205 = vld [vmem:[%s1 + $0x528] sm:$0xff]
    %v206 = vld [vmem:[%s1 + $0x530] sm:$0xff]
    %v207 = vld [vmem:[%s1 + $0x538] sm:$0xff]
    %v208 = vld [vmem:[%s1 + $0x540] sm:$0xff]
    %v209 = vld [vmem:[%s1 + $0x548] sm:$0xff]
    %v210 = vld [vmem:[%s1 + $0x550] sm:$0xff]
    %v211 = vld [vmem:[%s1 + $0x558] sm:$0xff]
    %v212 = vld [vmem:[%s1 + $0x560] sm:$0xff]
    %v213 = vld [vmem:[%s1 + $0x568] sm:$0xff]
    %v214 = vld [vmem:[%s1 + $0x570] sm:$0xff]
    %v215 = vld [vmem:[%s1 + $0x578] sm:$0xff]
    %v216 = vld [vmem:[%s1 + $0x580] sm:$0xff]
    %v217 = vld [vmem:[%s1 + $0x588] sm:$0xff]
    %v218 = vld [vmem:[%s1 + $0x590] sm:$0xff]
    %v219 = vld [vmem:[%s1 + $0x598] sm:$0xff]
    %v220 = vld [vmem:[%s1 + $0x5a0] sm:$0xff]
    %v221 = vld [vmem:[%s1 + $0x5a8] sm:$0xff]
    %v222 = vld [vmem:[%s1 + $0x5b0] sm:$0xff]
    %v223 = vld [vmem:[%s1 + $0x5b8] sm:$0xff]
    %v224 = vld [vmem:[%s1 + $0x5c0] sm:$0xff]
    %v225 = vld [vmem:[%s1 + $0x5c8] sm:$0xff]
    %v226 = vld [vmem:[%s1 + $0x5d0] sm:$0xff]
    %v227 = vld [vmem:[%s1 + $0x5d8] sm:$0xff]
    %v228 = vld [vmem:[%s1 + $0x5e0] sm:$0xff]
    %v229 = vld [vmem:[%s1 + $0x5e8] sm:$0xff]
    %v230 = vld [vmem:[%s1 + $0x5f0] sm:$0xff]
    %v231 = vld [vmem:[%s1 + $0x5f8] sm:$0xff]
    %v232 = vld [vmem:[%s2] sm:$0xf]
    %v234 = vlaneseq
    %v235 = vshrl.u32 %v234, 7
    %v236 = vsub.s32 0, %v235
    %v237 = vrot.slane %v232, %v236
    %v238 = vlaneseq
    %v239 = vshrl.u32 %v238, 7
    %v240 = vsub.s32 1, %v239
    %v241 = vrot.slane %v232, %v240
    %v242 = vlaneseq
    %v243 = vshrl.u32 %v242, 7
    %v244 = vsub.s32 2, %v243
    %v245 = vrot.slane %v232, %v244
    %v246 = vlaneseq
    %v247 = vshrl.u32 %v246, 7
    %v248 = vsub.s32 3, %v247
    %v249 = vrot.slane %v232, %v248
    %v257 = vunpack.c.l.b16 %v37
    %v258 = vunpack.c.h.b16 %v37
    %v259 = vunpack.c.l.b16 %v38
    %v260 = vunpack.c.h.b16 %v38
    %v261 = vunpack.c.l.b16 %v39
    %v262 = vunpack.c.h.b16 %v39
    %v263 = vpack.c.b16 %v257, %v257
    %v264 = vpack.c.b16 %v258, %v258
    %v265 = vpack.c.b16 %v259, %v259
    %v266 = vpack.c.b16 %v260, %v260
    %v267 = vpack.c.b16 %v261, %v261
    %v268 = vpack.c.b16 %v262, %v262
    %v467 = vunpack.c.l.b16 %v40
    %v468 = vunpack.c.h.b16 %v40
    %v469 = vunpack.c.l.b16 %v41
    %v470 = vunpack.c.h.b16 %v41
    %v471 = vunpack.c.l.b16 %v42
    %v472 = vunpack.c.h.b16 %v42
    %v473 = vunpack.c.l.b16 %v43
    %v474 = vunpack.c.h.b16 %v43
    %v475 = vunpack.c.l.b16 %v44
    %v476 = vunpack.c.h.b16 %v44
    %v477 = vunpack.c.l.b16 %v45
    %v478 = vunpack.c.h.b16 %v45
    %v479 = vunpack.c.l.b16 %v46
    %v480 = vunpack.c.h.b16 %v46
    %v481 = vunpack.c.l.b16 %v47
    %v482 = vunpack.c.h.b16 %v47
    %v483 = vunpack.c.l.b16 %v48
    %v484 = vunpack.c.h.b16 %v48
    %v485 = vunpack.c.l.b16 %v49
    %v486 = vunpack.c.h.b16 %v49
    %v487 = vunpack.c.l.b16 %v50
    %v488 = vunpack.c.h.b16 %v50
    %v489 = vunpack.c.l.b16 %v51
    %v490 = vunpack.c.h.b16 %v51
    %v491 = vunpack.c.l.b16 %v52
    %v492 = vunpack.c.h.b16 %v52
    %v493 = vunpack.c.l.b16 %v53
    %v494 = vunpack.c.h.b16 %v53
    %v495 = vunpack.c.l.b16 %v54
    %v496 = vunpack.c.h.b16 %v54
    %v497 = vunpack.c.l.b16 %v55
    %v498 = vunpack.c.h.b16 %v55
    %v499 = vunpack.c.l.b16 %v56
    %v500 = vunpack.c.h.b16 %v56
    %v501 = vunpack.c.l.b16 %v57
    %v502 = vunpack.c.h.b16 %v57
    %v503 = vunpack.c.l.b16 %v58
    %v504 = vunpack.c.h.b16 %v58
    %v505 = vunpack.c.l.b16 %v59
    %v506 = vunpack.c.h.b16 %v59
    %v507 = vunpack.c.l.b16 %v60
    %v508 = vunpack.c.h.b16 %v60
    %v509 = vunpack.c.l.b16 %v61
    %v510 = vunpack.c.h.b16 %v61
    %v511 = vunpack.c.l.b16 %v62
    %v512 = vunpack.c.h.b16 %v62
    %v513 = vunpack.c.l.b16 %v63
    %v514 = vunpack.c.h.b16 %v63
    %v515 = vunpack.c.l.b16 %v64
    %v516 = vunpack.c.h.b16 %v64
    %v517 = vunpack.c.l.b16 %v65
    %v518 = vunpack.c.h.b16 %v65
    %v519 = vunpack.c.l.b16 %v66
    %v520 = vunpack.c.h.b16 %v66
    %v521 = vunpack.c.l.b16 %v67
    %v522 = vunpack.c.h.b16 %v67
    %v523 = vunpack.c.l.b16 %v68
    %v524 = vunpack.c.h.b16 %v68
    %v525 = vunpack.c.l.b16 %v69
    %v526 = vunpack.c.h.b16 %v69
    %v527 = vunpack.c.l.b16 %v70
    %v528 = vunpack.c.h.b16 %v70
    %v529 = vunpack.c.l.b16 %v71
    %v530 = vunpack.c.h.b16 %v71
    %v531 = vunpack.c.l.b16 %v72
    %v532 = vunpack.c.h.b16 %v72
    %v533 = vunpack.c.l.b16 %v73
    %v534 = vunpack.c.h.b16 %v73
    %v535 = vunpack.c.l.b16 %v74
    %v536 = vunpack.c.h.b16 %v74
    %v537 = vunpack.c.l.b16 %v75
    %v538 = vunpack.c.h.b16 %v75
    %v539 = vunpack.c.l.b16 %v76
    %v540 = vunpack.c.h.b16 %v76
    %v541 = vunpack.c.l.b16 %v77
    %v542 = vunpack.c.h.b16 %v77
    %v543 = vunpack.c.l.b16 %v78
    %v544 = vunpack.c.h.b16 %v78
    %v545 = vunpack.c.l.b16 %v79
    %v546 = vunpack.c.h.b16 %v79
    %v547 = vunpack.c.l.b16 %v80
    %v548 = vunpack.c.h.b16 %v80
    %v549 = vunpack.c.l.b16 %v81
    %v550 = vunpack.c.h.b16 %v81
    %v551 = vunpack.c.l.b16 %v82
    %v552 = vunpack.c.h.b16 %v82
    %v553 = vunpack.c.l.b16 %v83
    %v554 = vunpack.c.h.b16 %v83
    %v555 = vunpack.c.l.b16 %v84
    %v556 = vunpack.c.h.b16 %v84
    %v557 = vunpack.c.l.b16 %v85
    %v558 = vunpack.c.h.b16 %v85
    %v559 = vunpack.c.l.b16 %v86
    %v560 = vunpack.c.h.b16 %v86
    %v561 = vunpack.c.l.b16 %v87
    %v562 = vunpack.c.h.b16 %v87
    %v563 = vunpack.c.l.b16 %v88
    %v564 = vunpack.c.h.b16 %v88
    %v565 = vunpack.c.l.b16 %v89
    %v566 = vunpack.c.h.b16 %v89
    %v567 = vunpack.c.l.b16 %v90
    %v568 = vunpack.c.h.b16 %v90
    %v569 = vunpack.c.l.b16 %v91
    %v570 = vunpack.c.h.b16 %v91
    %v571 = vunpack.c.l.b16 %v92
    %v572 = vunpack.c.h.b16 %v92
    %v573 = vunpack.c.l.b16 %v93
    %v574 = vunpack.c.h.b16 %v93
    %v575 = vunpack.c.l.b16 %v94
    %v576 = vunpack.c.h.b16 %v94
    %v577 = vunpack.c.l.b16 %v95
    %v578 = vunpack.c.h.b16 %v95
    %v579 = vunpack.c.l.b16 %v96
    %v580 = vunpack.c.h.b16 %v96
    %v581 = vunpack.c.l.b16 %v97
    %v582 = vunpack.c.h.b16 %v97
    %v583 = vunpack.c.l.b16 %v98
    %v584 = vunpack.c.h.b16 %v98
    %v585 = vunpack.c.l.b16 %v99
    %v586 = vunpack.c.h.b16 %v99
    %v587 = vunpack.c.l.b16 %v100
    %v588 = vunpack.c.h.b16 %v100
    %v589 = vunpack.c.l.b16 %v101
    %v590 = vunpack.c.h.b16 %v101
    %v591 = vunpack.c.l.b16 %v102
    %v592 = vunpack.c.h.b16 %v102
    %v593 = vunpack.c.l.b16 %v103
    %v594 = vunpack.c.h.b16 %v103
    %v595 = vunpack.c.l.b16 %v104
    %v596 = vunpack.c.h.b16 %v104
    %v597 = vunpack.c.l.b16 %v105
    %v598 = vunpack.c.h.b16 %v105
    %v599 = vunpack.c.l.b16 %v106
    %v600 = vunpack.c.h.b16 %v106
    %v601 = vunpack.c.l.b16 %v107
    %v602 = vunpack.c.h.b16 %v107
    %v603 = vunpack.c.l.b16 %v108
    %v604 = vunpack.c.h.b16 %v108
    %v605 = vunpack.c.l.b16 %v109
    %v606 = vunpack.c.h.b16 %v109
    %v607 = vunpack.c.l.b16 %v110
    %v608 = vunpack.c.h.b16 %v110
    %v609 = vunpack.c.l.b16 %v111
    %v610 = vunpack.c.h.b16 %v111
    %v611 = vunpack.c.l.b16 %v112
    %v612 = vunpack.c.h.b16 %v112
    %v613 = vunpack.c.l.b16 %v113
    %v614 = vunpack.c.h.b16 %v113
    %v615 = vunpack.c.l.b16 %v114
    %v616 = vunpack.c.h.b16 %v114
    %v617 = vunpack.c.l.b16 %v115
    %v618 = vunpack.c.h.b16 %v115
    %v619 = vunpack.c.l.b16 %v116
    %v620 = vunpack.c.h.b16 %v116
    %v621 = vunpack.c.l.b16 %v117
    %v622 = vunpack.c.h.b16 %v117
    %v623 = vunpack.c.l.b16 %v118
    %v624 = vunpack.c.h.b16 %v118
    %v625 = vunpack.c.l.b16 %v119
    %v626 = vunpack.c.h.b16 %v119
    %v627 = vunpack.c.l.b16 %v120
    %v628 = vunpack.c.h.b16 %v120
    %v629 = vunpack.c.l.b16 %v121
    %v630 = vunpack.c.h.b16 %v121
    %v631 = vunpack.c.l.b16 %v122
    %v632 = vunpack.c.h.b16 %v122
    %v633 = vunpack.c.l.b16 %v123
    %v634 = vunpack.c.h.b16 %v123
    %v635 = vunpack.c.l.b16 %v124
    %v636 = vunpack.c.h.b16 %v124
    %v637 = vunpack.c.l.b16 %v125
    %v638 = vunpack.c.h.b16 %v125
    %v639 = vunpack.c.l.b16 %v126
    %v640 = vunpack.c.h.b16 %v126
    %v641 = vunpack.c.l.b16 %v127
    %v642 = vunpack.c.h.b16 %v127
    %v643 = vunpack.c.l.b16 %v128
    %v644 = vunpack.c.h.b16 %v128
    %v645 = vunpack.c.l.b16 %v129
    %v646 = vunpack.c.h.b16 %v129
    %v647 = vunpack.c.l.b16 %v130
    %v648 = vunpack.c.h.b16 %v130
    %v649 = vunpack.c.l.b16 %v131
    %v650 = vunpack.c.h.b16 %v131
    %v651 = vunpack.c.l.b16 %v132
    %v652 = vunpack.c.h.b16 %v132
    %v653 = vunpack.c.l.b16 %v133
    %v654 = vunpack.c.h.b16 %v133
    %v655 = vunpack.c.l.b16 %v134
    %v656 = vunpack.c.h.b16 %v134
    %v657 = vunpack.c.l.b16 %v135
    %v658 = vunpack.c.h.b16 %v135
    %v659 = vunpack.c.l.b16 %v136
    %v660 = vunpack.c.h.b16 %v136
    %v661 = vunpack.c.l.b16 %v137
    %v662 = vunpack.c.h.b16 %v137
    %v663 = vunpack.c.l.b16 %v138
    %v664 = vunpack.c.h.b16 %v138
    %v665 = vunpack.c.l.b16 %v139
    %v666 = vunpack.c.h.b16 %v139
    %v667 = vunpack.c.l.b16 %v140
    %v668 = vunpack.c.h.b16 %v140
    %v669 = vunpack.c.l.b16 %v141
    %v670 = vunpack.c.h.b16 %v141
    %v671 = vunpack.c.l.b16 %v142
    %v672 = vunpack.c.h.b16 %v142
    %v673 = vunpack.c.l.b16 %v143
    %v674 = vunpack.c.h.b16 %v143
    %v675 = vunpack.c.l.b16 %v144
    %v676 = vunpack.c.h.b16 %v144
    %v677 = vunpack.c.l.b16 %v145
    %v678 = vunpack.c.h.b16 %v145
    %v679 = vunpack.c.l.b16 %v146
    %v680 = vunpack.c.h.b16 %v146
    %v681 = vunpack.c.l.b16 %v147
    %v682 = vunpack.c.h.b16 %v147
    %v683 = vunpack.c.l.b16 %v148
    %v684 = vunpack.c.h.b16 %v148
    %v685 = vunpack.c.l.b16 %v149
    %v686 = vunpack.c.h.b16 %v149
    %v687 = vunpack.c.l.b16 %v150
    %v688 = vunpack.c.h.b16 %v150
    %v689 = vunpack.c.l.b16 %v151
    %v690 = vunpack.c.h.b16 %v151
    %v691 = vunpack.c.l.b16 %v152
    %v692 = vunpack.c.h.b16 %v152
    %v693 = vunpack.c.l.b16 %v153
    %v694 = vunpack.c.h.b16 %v153
    %v695 = vunpack.c.l.b16 %v154
    %v696 = vunpack.c.h.b16 %v154
    %v697 = vunpack.c.l.b16 %v155
    %v698 = vunpack.c.h.b16 %v155
    %v699 = vunpack.c.l.b16 %v156
    %v700 = vunpack.c.h.b16 %v156
    %v701 = vunpack.c.l.b16 %v157
    %v702 = vunpack.c.h.b16 %v157
    %v703 = vunpack.c.l.b16 %v158
    %v704 = vunpack.c.h.b16 %v158
    %v705 = vunpack.c.l.b16 %v159
    %v706 = vunpack.c.h.b16 %v159
    %v707 = vunpack.c.l.b16 %v160
    %v708 = vunpack.c.h.b16 %v160
    %v709 = vunpack.c.l.b16 %v161
    %v710 = vunpack.c.h.b16 %v161
    %v711 = vunpack.c.l.b16 %v162
    %v712 = vunpack.c.h.b16 %v162
    %v713 = vunpack.c.l.b16 %v163
    %v714 = vunpack.c.h.b16 %v163
    %v715 = vunpack.c.l.b16 %v164
    %v716 = vunpack.c.h.b16 %v164
    %v717 = vunpack.c.l.b16 %v165
    %v718 = vunpack.c.h.b16 %v165
    %v719 = vunpack.c.l.b16 %v166
    %v720 = vunpack.c.h.b16 %v166
    %v721 = vunpack.c.l.b16 %v167
    %v722 = vunpack.c.h.b16 %v167
    %v723 = vunpack.c.l.b16 %v168
    %v724 = vunpack.c.h.b16 %v168
    %v725 = vunpack.c.l.b16 %v169
    %v726 = vunpack.c.h.b16 %v169
    %v727 = vunpack.c.l.b16 %v170
    %v728 = vunpack.c.h.b16 %v170
    %v729 = vunpack.c.l.b16 %v171
    %v730 = vunpack.c.h.b16 %v171
    %v731 = vunpack.c.l.b16 %v172
    %v732 = vunpack.c.h.b16 %v172
    %v733 = vunpack.c.l.b16 %v173
    %v734 = vunpack.c.h.b16 %v173
    %v735 = vunpack.c.l.b16 %v174
    %v736 = vunpack.c.h.b16 %v174
    %v737 = vunpack.c.l.b16 %v175
    %v738 = vunpack.c.h.b16 %v175
    %v739 = vunpack.c.l.b16 %v176
    %v740 = vunpack.c.h.b16 %v176
    %v741 = vunpack.c.l.b16 %v177
    %v742 = vunpack.c.h.b16 %v177
    %v743 = vunpack.c.l.b16 %v178
    %v744 = vunpack.c.h.b16 %v178
    %v745 = vunpack.c.l.b16 %v179
    %v746 = vunpack.c.h.b16 %v179
    %v747 = vunpack.c.l.b16 %v180
    %v748 = vunpack.c.h.b16 %v180
    %v749 = vunpack.c.l.b16 %v181
    %v750 = vunpack.c.h.b16 %v181
    %v751 = vunpack.c.l.b16 %v182
    %v752 = vunpack.c.h.b16 %v182
    %v753 = vunpack.c.l.b16 %v183
    %v754 = vunpack.c.h.b16 %v183
    %v755 = vunpack.c.l.b16 %v184
    %v756 = vunpack.c.h.b16 %v184
    %v757 = vunpack.c.l.b16 %v185
    %v758 = vunpack.c.h.b16 %v185
    %v759 = vunpack.c.l.b16 %v186
    %v760 = vunpack.c.h.b16 %v186
    %v761 = vunpack.c.l.b16 %v187
    %v762 = vunpack.c.h.b16 %v187
    %v763 = vunpack.c.l.b16 %v188
    %v764 = vunpack.c.h.b16 %v188
    %v765 = vunpack.c.l.b16 %v189
    %v766 = vunpack.c.h.b16 %v189
    %v767 = vunpack.c.l.b16 %v190
    %v768 = vunpack.c.h.b16 %v190
    %v769 = vunpack.c.l.b16 %v191
    %v770 = vunpack.c.h.b16 %v191
    %v771 = vunpack.c.l.b16 %v192
    %v772 = vunpack.c.h.b16 %v192
    %v773 = vunpack.c.l.b16 %v193
    %v774 = vunpack.c.h.b16 %v193
    %v775 = vunpack.c.l.b16 %v194
    %v776 = vunpack.c.h.b16 %v194
    %v777 = vunpack.c.l.b16 %v195
    %v778 = vunpack.c.h.b16 %v195
    %v779 = vunpack.c.l.b16 %v196
    %v780 = vunpack.c.h.b16 %v196
    %v781 = vunpack.c.l.b16 %v197
    %v782 = vunpack.c.h.b16 %v197
    %v783 = vunpack.c.l.b16 %v198
    %v784 = vunpack.c.h.b16 %v198
    %v785 = vunpack.c.l.b16 %v199
    %v786 = vunpack.c.h.b16 %v199
    %v787 = vunpack.c.l.b16 %v200
    %v788 = vunpack.c.h.b16 %v200
    %v789 = vunpack.c.l.b16 %v201
    %v790 = vunpack.c.h.b16 %v201
    %v791 = vunpack.c.l.b16 %v202
    %v792 = vunpack.c.h.b16 %v202
    %v793 = vunpack.c.l.b16 %v203
    %v794 = vunpack.c.h.b16 %v203
    %v795 = vunpack.c.l.b16 %v204
    %v796 = vunpack.c.h.b16 %v204
    %v797 = vunpack.c.l.b16 %v205
    %v798 = vunpack.c.h.b16 %v205
    %v799 = vunpack.c.l.b16 %v206
    %v800 = vunpack.c.h.b16 %v206
    %v801 = vunpack.c.l.b16 %v207
    %v802 = vunpack.c.h.b16 %v207
    %v803 = vunpack.c.l.b16 %v208
    %v804 = vunpack.c.h.b16 %v208
    %v805 = vunpack.c.l.b16 %v209
    %v806 = vunpack.c.h.b16 %v209
    %v807 = vunpack.c.l.b16 %v210
    %v808 = vunpack.c.h.b16 %v210
    %v809 = vunpack.c.l.b16 %v211
    %v810 = vunpack.c.h.b16 %v211
    %v811 = vunpack.c.l.b16 %v212
    %v812 = vunpack.c.h.b16 %v212
    %v813 = vunpack.c.l.b16 %v213
    %v814 = vunpack.c.h.b16 %v213
    %v815 = vunpack.c.l.b16 %v214
    %v816 = vunpack.c.h.b16 %v214
    %v817 = vunpack.c.l.b16 %v215
    %v818 = vunpack.c.h.b16 %v215
    %v819 = vunpack.c.l.b16 %v216
    %v820 = vunpack.c.h.b16 %v216
    %v821 = vunpack.c.l.b16 %v217
    %v822 = vunpack.c.h.b16 %v217
    %v823 = vunpack.c.l.b16 %v218
    %v824 = vunpack.c.h.b16 %v218
    %v825 = vunpack.c.l.b16 %v219
    %v826 = vunpack.c.h.b16 %v219
    %v827 = vunpack.c.l.b16 %v220
    %v828 = vunpack.c.h.b16 %v220
    %v829 = vunpack.c.l.b16 %v221
    %v830 = vunpack.c.h.b16 %v221
    %v831 = vunpack.c.l.b16 %v222
    %v832 = vunpack.c.h.b16 %v222
    %v833 = vunpack.c.l.b16 %v223
    %v834 = vunpack.c.h.b16 %v223
    %v835 = vunpack.c.l.b16 %v224
    %v836 = vunpack.c.h.b16 %v224
    %v837 = vunpack.c.l.b16 %v225
    %v838 = vunpack.c.h.b16 %v225
    %v839 = vunpack.c.l.b16 %v226
    %v840 = vunpack.c.h.b16 %v226
    %v841 = vunpack.c.l.b16 %v227
    %v842 = vunpack.c.h.b16 %v227
    %v843 = vunpack.c.l.b16 %v228
    %v844 = vunpack.c.h.b16 %v228
    %v845 = vunpack.c.l.b16 %v229
    %v846 = vunpack.c.h.b16 %v229
    %v847 = vunpack.c.l.b16 %v230
    %v848 = vunpack.c.h.b16 %v230
    %v849 = vunpack.c.l.b16 %v231
    %v850 = vunpack.c.h.b16 %v231
    %v851 = vpack.c.b16 %v471, %v467
    %v852 = vpack.c.b16 %v472, %v468
    %v853 = vpack.c.b16 %v473, %v469
    %v854 = vpack.c.b16 %v474, %v470
    %v855 = vpack.c.b16 %v479, %v475
    %v856 = vpack.c.b16 %v480, %v476
    %v857 = vpack.c.b16 %v481, %v477
    %v858 = vpack.c.b16 %v482, %v478
    %v859 = vpack.c.b16 %v487, %v483
    %v860 = vpack.c.b16 %v488, %v484
    %v861 = vpack.c.b16 %v489, %v485
    %v862 = vpack.c.b16 %v490, %v486
    %v863 = vpack.c.b16 %v495, %v491
    %v864 = vpack.c.b16 %v496, %v492
    %v865 = vpack.c.b16 %v497, %v493
    %v866 = vpack.c.b16 %v498, %v494
    %v867 = vpack.c.b16 %v503, %v499
    %v868 = vpack.c.b16 %v504, %v500
    %v869 = vpack.c.b16 %v505, %v501
    %v870 = vpack.c.b16 %v506, %v502
    %v871 = vpack.c.b16 %v511, %v507
    %v872 = vpack.c.b16 %v512, %v508
    %v873 = vpack.c.b16 %v513, %v509
    %v874 = vpack.c.b16 %v514, %v510
    %v875 = vpack.c.b16 %v519, %v515
    %v876 = vpack.c.b16 %v520, %v516
    %v877 = vpack.c.b16 %v521, %v517
    %v878 = vpack.c.b16 %v522, %v518
    %v879 = vpack.c.b16 %v527, %v523
    %v880 = vpack.c.b16 %v528, %v524
    %v881 = vpack.c.b16 %v529, %v525
    %v882 = vpack.c.b16 %v530, %v526
    %v883 = vpack.c.b16 %v535, %v531
    %v884 = vpack.c.b16 %v536, %v532
    %v885 = vpack.c.b16 %v537, %v533
    %v886 = vpack.c.b16 %v538, %v534
    %v887 = vpack.c.b16 %v543, %v539
    %v888 = vpack.c.b16 %v544, %v540
    %v889 = vpack.c.b16 %v545, %v541
    %v890 = vpack.c.b16 %v546, %v542
    %v891 = vpack.c.b16 %v551, %v547
    %v892 = vpack.c.b16 %v552, %v548
    %v893 = vpack.c.b16 %v553, %v549
    %v894 = vpack.c.b16 %v554, %v550
    %v895 = vpack.c.b16 %v559, %v555
    %v896 = vpack.c.b16 %v560, %v556
    %v897 = vpack.c.b16 %v561, %v557
    %v898 = vpack.c.b16 %v562, %v558
    %v899 = vpack.c.b16 %v567, %v563
    %v900 = vpack.c.b16 %v568, %v564
    %v901 = vpack.c.b16 %v569, %v565
    %v902 = vpack.c.b16 %v570, %v566
    %v903 = vpack.c.b16 %v575, %v571
    %v904 = vpack.c.b16 %v576, %v572
    %v905 = vpack.c.b16 %v577, %v573
    %v906 = vpack.c.b16 %v578, %v574
    %v907 = vpack.c.b16 %v583, %v579
    %v908 = vpack.c.b16 %v584, %v580
    %v909 = vpack.c.b16 %v585, %v581
    %v910 = vpack.c.b16 %v586, %v582
    %v911 = vpack.c.b16 %v591, %v587
    %v912 = vpack.c.b16 %v592, %v588
    %v913 = vpack.c.b16 %v593, %v589
    %v914 = vpack.c.b16 %v594, %v590
    %v915 = vpack.c.b16 %v599, %v595
    %v916 = vpack.c.b16 %v600, %v596
    %v917 = vpack.c.b16 %v601, %v597
    %v918 = vpack.c.b16 %v602, %v598
    %v919 = vpack.c.b16 %v607, %v603
    %v920 = vpack.c.b16 %v608, %v604
    %v921 = vpack.c.b16 %v609, %v605
    %v922 = vpack.c.b16 %v610, %v606
    %v923 = vpack.c.b16 %v615, %v611
    %v924 = vpack.c.b16 %v616, %v612
    %v925 = vpack.c.b16 %v617, %v613
    %v926 = vpack.c.b16 %v618, %v614
    %v927 = vpack.c.b16 %v623, %v619
    %v928 = vpack.c.b16 %v624, %v620
    %v929 = vpack.c.b16 %v625, %v621
    %v930 = vpack.c.b16 %v626, %v622
    %v931 = vpack.c.b16 %v631, %v627
    %v932 = vpack.c.b16 %v632, %v628
    %v933 = vpack.c.b16 %v633, %v629
    %v934 = vpack.c.b16 %v634, %v630
    %v935 = vpack.c.b16 %v639, %v635
    %v936 = vpack.c.b16 %v640, %v636
    %v937 = vpack.c.b16 %v641, %v637
    %v938 = vpack.c.b16 %v642, %v638
    %v939 = vpack.c.b16 %v647, %v643
    %v940 = vpack.c.b16 %v648, %v644
    %v941 = vpack.c.b16 %v649, %v645
    %v942 = vpack.c.b16 %v650, %v646
    %v943 = vpack.c.b16 %v655, %v651
    %v944 = vpack.c.b16 %v656, %v652
    %v945 = vpack.c.b16 %v657, %v653
    %v946 = vpack.c.b16 %v658, %v654
    %v947 = vpack.c.b16 %v663, %v659
    %v948 = vpack.c.b16 %v664, %v660
    %v949 = vpack.c.b16 %v665, %v661
    %v950 = vpack.c.b16 %v666, %v662
    %v951 = vpack.c.b16 %v671, %v667
    %v952 = vpack.c.b16 %v672, %v668
    %v953 = vpack.c.b16 %v673, %v669
    %v954 = vpack.c.b16 %v674, %v670
    %v955 = vpack.c.b16 %v679, %v675
    %v956 = vpack.c.b16 %v680, %v676
    %v957 = vpack.c.b16 %v681, %v677
    %v958 = vpack.c.b16 %v682, %v678
    %v959 = vpack.c.b16 %v687, %v683
    %v960 = vpack.c.b16 %v688, %v684
    %v961 = vpack.c.b16 %v689, %v685
    %v962 = vpack.c.b16 %v690, %v686
    %v963 = vpack.c.b16 %v695, %v691
    %v964 = vpack.c.b16 %v696, %v692
    %v965 = vpack.c.b16 %v697, %v693
    %v966 = vpack.c.b16 %v698, %v694
    %v967 = vpack.c.b16 %v703, %v699
    %v968 = vpack.c.b16 %v704, %v700
    %v969 = vpack.c.b16 %v705, %v701
    %v970 = vpack.c.b16 %v706, %v702
    %v971 = vpack.c.b16 %v711, %v707
    %v972 = vpack.c.b16 %v712, %v708
    %v973 = vpack.c.b16 %v713, %v709
    %v974 = vpack.c.b16 %v714, %v710
    %v975 = vpack.c.b16 %v719, %v715
    %v976 = vpack.c.b16 %v720, %v716
    %v977 = vpack.c.b16 %v721, %v717
    %v978 = vpack.c.b16 %v722, %v718
    %v979 = vpack.c.b16 %v727, %v723
    %v980 = vpack.c.b16 %v728, %v724
    %v981 = vpack.c.b16 %v729, %v725
    %v982 = vpack.c.b16 %v730, %v726
    %v983 = vpack.c.b16 %v735, %v731
    %v984 = vpack.c.b16 %v736, %v732
    %v985 = vpack.c.b16 %v737, %v733
    %v986 = vpack.c.b16 %v738, %v734
    %v987 = vpack.c.b16 %v743, %v739
    %v988 = vpack.c.b16 %v744, %v740
    %v989 = vpack.c.b16 %v745, %v741
    %v990 = vpack.c.b16 %v746, %v742
    %v991 = vpack.c.b16 %v751, %v747
    %v992 = vpack.c.b16 %v752, %v748
    %v993 = vpack.c.b16 %v753, %v749
    %v994 = vpack.c.b16 %v754, %v750
    %v995 = vpack.c.b16 %v759, %v755
    %v996 = vpack.c.b16 %v760, %v756
    %v997 = vpack.c.b16 %v761, %v757
    %v998 = vpack.c.b16 %v762, %v758
    %v999 = vpack.c.b16 %v767, %v763
    %v1000 = vpack.c.b16 %v768, %v764
    %v1001 = vpack.c.b16 %v769, %v765
    %v1002 = vpack.c.b16 %v770, %v766
    %v1003 = vpack.c.b16 %v775, %v771
    %v1004 = vpack.c.b16 %v776, %v772
    %v1005 = vpack.c.b16 %v777, %v773
    %v1006 = vpack.c.b16 %v778, %v774
    %v1007 = vpack.c.b16 %v783, %v779
    %v1008 = vpack.c.b16 %v784, %v780
    %v1009 = vpack.c.b16 %v785, %v781
    %v1010 = vpack.c.b16 %v786, %v782
    %v1011 = vpack.c.b16 %v791, %v787
    %v1012 = vpack.c.b16 %v792, %v788
    %v1013 = vpack.c.b16 %v793, %v789
    %v1014 = vpack.c.b16 %v794, %v790
    %v1015 = vpack.c.b16 %v799, %v795
    %v1016 = vpack.c.b16 %v800, %v796
    %v1017 = vpack.c.b16 %v801, %v797
    %v1018 = vpack.c.b16 %v802, %v798
    %v1019 = vpack.c.b16 %v807, %v803
    %v1020 = vpack.c.b16 %v808, %v804
    %v1021 = vpack.c.b16 %v809, %v805
    %v1022 = vpack.c.b16 %v810, %v806
    %v1023 = vpack.c.b16 %v815, %v811
    %v1024 = vpack.c.b16 %v816, %v812
    %v1025 = vpack.c.b16 %v817, %v813
    %v1026 = vpack.c.b16 %v818, %v814
    %v1027 = vpack.c.b16 %v823, %v819
    %v1028 = vpack.c.b16 %v824, %v820
    %v1029 = vpack.c.b16 %v825, %v821
    %v1030 = vpack.c.b16 %v826, %v822
    %v1031 = vpack.c.b16 %v831, %v827
    %v1032 = vpack.c.b16 %v832, %v828
    %v1033 = vpack.c.b16 %v833, %v829
    %v1034 = vpack.c.b16 %v834, %v830
    %v1035 = vpack.c.b16 %v839, %v835
    %v1036 = vpack.c.b16 %v840, %v836
    %v1037 = vpack.c.b16 %v841, %v837
    %v1038 = vpack.c.b16 %v842, %v838
    %v1039 = vpack.c.b16 %v847, %v843
    %v1040 = vpack.c.b16 %v848, %v844
    %v1041 = vpack.c.b16 %v849, %v845
    %v1042 = vpack.c.b16 %v850, %v846
    %1235 = vmatprep.subr.bf16.mxu0 %v852
    %1236 = vmatpush1.bf16.msra.mxu0 %v851
    %1237 = vmatprep.subr.bf16.mxu0 %v856
    %1238 = vmatpush1.bf16.msra.mxu0 %v855
    %1239 = vmatprep.subr.bf16.mxu0 %v860
    %1240 = vmatpush1.bf16.msra.mxu0 %v859
    %1241 = vmatprep.subr.bf16.mxu0 %v864
    %1242 = vmatpush1.bf16.msra.mxu0 %v863
    %1243 = vmatprep.subr.bf16.mxu0 %v868
    %1244 = vmatpush1.bf16.msra.mxu0 %v867
    %1245 = vmatprep.subr.bf16.mxu0 %v872
    %1246 = vmatpush1.bf16.msra.mxu0 %v871
    %1247 = vmatprep.subr.bf16.mxu0 %v876
    %1248 = vmatpush1.bf16.msra.mxu0 %v875
    %1249 = vmatprep.subr.bf16.mxu0 %v880
    %1250 = vmatpush1.bf16.msra.mxu0 %v879
    %1251 = vmatprep.subr.bf16.mxu0 %v884
    %1252 = vmatpush1.bf16.msra.mxu0 %v883
    %1253 = vmatprep.subr.bf16.mxu0 %v888
    %1254 = vmatpush1.bf16.msra.mxu0 %v887
    %1255 = vmatprep.subr.bf16.mxu0 %v892
    %1256 = vmatpush1.bf16.msra.mxu0 %v891
    %1257 = vmatprep.subr.bf16.mxu0 %v896
    %1258 = vmatpush1.bf16.msra.mxu0 %v895
    %1259 = vmatprep.subr.bf16.mxu0 %v900
    %1260 = vmatpush1.bf16.msra.mxu0 %v899
    %1261 = vmatprep.subr.bf16.mxu0 %v904
    %1262 = vmatpush1.bf16.msra.mxu0 %v903
    %1263 = vmatprep.subr.bf16.mxu0 %v908
    %1264 = vmatpush1.bf16.msra.mxu0 %v907
    %1265 = vmatprep.subr.bf16.mxu0 %v912
    %1266 = vmatpush1.bf16.msra.mxu0 %v911
    %1267 = vmatprep.mubr.bf16.mxu0 %v264
    %1268 = vmatmul.mubr.bf16.gmra.mrb[0].mxu0 %v263
    %v1269 = vpop.f32.mrb[0].mxu0
    %v1270 = vadd.f32 %v237, %v1269
    %v1271 = vpop.f32.mrb[0].mxu0
    %v1272 = vadd.f32 %v241, %v1271
    %v1273 = vpop.f32.mrb[0].mxu0
    %v1274 = vpop.f32.mrb[0].mxu0
    %1275 = vdwg.mxu0
    %1276 = vmatprep.subr.bf16.mxu0 %v916
    %1277 = vmatpush1.bf16.msra.mxu0 %v915
    %1278 = vmatprep.subr.bf16.mxu0 %v920
    %1279 = vmatpush1.bf16.msra.mxu0 %v919
    %1280 = vmatprep.subr.bf16.mxu0 %v924
    %1281 = vmatpush1.bf16.msra.mxu0 %v923
    %1282 = vmatprep.subr.bf16.mxu0 %v928
    %1283 = vmatpush1.bf16.msra.mxu0 %v927
    %1284 = vmatprep.subr.bf16.mxu0 %v932
    %1285 = vmatpush1.bf16.msra.mxu0 %v931
    %1286 = vmatprep.subr.bf16.mxu0 %v936
    %1287 = vmatpush1.bf16.msra.mxu0 %v935
    %1288 = vmatprep.subr.bf16.mxu0 %v940
    %1289 = vmatpush1.bf16.msra.mxu0 %v939
    %1290 = vmatprep.subr.bf16.mxu0 %v944
    %1291 = vmatpush1.bf16.msra.mxu0 %v943
    %1292 = vmatprep.subr.bf16.mxu0 %v948
    %1293 = vmatpush1.bf16.msra.mxu0 %v947
    %1294 = vmatprep.subr.bf16.mxu0 %v952
    %1295 = vmatpush1.bf16.msra.mxu0 %v951
    %1296 = vmatprep.subr.bf16.mxu0 %v956
    %1297 = vmatpush1.bf16.msra.mxu0 %v955
    %1298 = vmatprep.subr.bf16.mxu0 %v960
    %1299 = vmatpush1.bf16.msra.mxu0 %v959
    %1300 = vmatprep.subr.bf16.mxu0 %v964
    %1301 = vmatpush1.bf16.msra.mxu0 %v963
    %1302 = vmatprep.subr.bf16.mxu0 %v968
    %1303 = vmatpush1.bf16.msra.mxu0 %v967
    %1304 = vmatprep.subr.bf16.mxu0 %v972
    %1305 = vmatpush1.bf16.msra.mxu0 %v971
    %1306 = vmatprep.subr.bf16.mxu0 %v976
    %1307 = vmatpush1.bf16.msra.mxu0 %v975
    %1308 = vmatprep.mubr.bf16.mxu0 %v266
    %1309 = vmatmul.mubr.bf16.gmra.mrb[0].mxu0 %v265
    %v1310 = vpop.f32.mrb[0].mxu0
    %v1311 = vadd.f32 %v1270, %v1310
    %v1312 = vpop.f32.mrb[0].mxu0
    %v1313 = vadd.f32 %v1272, %v1312
    %v1314 = vpop.f32.mrb[0].mxu0
    %v1315 = vpop.f32.mrb[0].mxu0
    %1316 = vdwg.mxu0
    %1317 = vmatprep.subr.bf16.mxu0 %v980
    %1318 = vmatpush1.bf16.msra.mxu0 %v979
    %1319 = vmatprep.subr.bf16.mxu0 %v984
    %1320 = vmatpush1.bf16.msra.mxu0 %v983
    %1321 = vmatprep.subr.bf16.mxu0 %v988
    %1322 = vmatpush1.bf16.msra.mxu0 %v987
    %1323 = vmatprep.subr.bf16.mxu0 %v992
    %1324 = vmatpush1.bf16.msra.mxu0 %v991
    %1325 = vmatprep.subr.bf16.mxu0 %v996
    %1326 = vmatpush1.bf16.msra.mxu0 %v995
    %1327 = vmatprep.subr.bf16.mxu0 %v1000
    %1328 = vmatpush1.bf16.msra.mxu0 %v999
    %1329 = vmatprep.subr.bf16.mxu0 %v1004
    %1330 = vmatpush1.bf16.msra.mxu0 %v1003
    %1331 = vmatprep.subr.bf16.mxu0 %v1008
    %1332 = vmatpush1.bf16.msra.mxu0 %v1007
    %1333 = vmatprep.subr.bf16.mxu0 %v1012
    %1334 = vmatpush1.bf16.msra.mxu0 %v1011
    %1335 = vmatprep.subr.bf16.mxu0 %v1016
    %1336 = vmatpush1.bf16.msra.mxu0 %v1015
    %1337 = vmatprep.subr.bf16.mxu0 %v1020
    %1338 = vmatpush1.bf16.msra.mxu0 %v1019
    %1339 = vmatprep.subr.bf16.mxu0 %v1024
    %1340 = vmatpush1.bf16.msra.mxu0 %v1023
    %1341 = vmatprep.subr.bf16.mxu0 %v1028
    %1342 = vmatpush1.bf16.msra.mxu0 %v1027
    %1343 = vmatprep.subr.bf16.mxu0 %v1032
    %1344 = vmatpush1.bf16.msra.mxu0 %v1031
    %1345 = vmatprep.subr.bf16.mxu0 %v1036
    %1346 = vmatpush1.bf16.msra.mxu0 %v1035
    %1347 = vmatprep.subr.bf16.mxu0 %v1040
    %1348 = vmatpush1.bf16.msra.mxu0 %v1039
    %1349 = vmatprep.mubr.bf16.mxu0 %v268
    %1350 = vmatmul.mubr.bf16.gmra.mrb[0].mxu0 %v267
    %v1351 = vpop.f32.mrb[0].mxu0
    %v1352 = vadd.f32 %v1311, %v1351
    %v1353 = vpop.f32.mrb[0].mxu0
    %v1354 = vadd.f32 %v1313, %v1353
    %v1355 = vpop.f32.mrb[0].mxu0
    %v1356 = vpop.f32.mrb[0].mxu0
    %1357 = vdwg.mxu0
    %1358 = vmatprep.subr.bf16.mxu0 %v854
    %1359 = vmatpush1.bf16.msra.mxu0 %v853
    %1360 = vmatprep.subr.bf16.mxu0 %v858
    %1361 = vmatpush1.bf16.msra.mxu0 %v857
    %1362 = vmatprep.subr.bf16.mxu0 %v862
    %1363 = vmatpush1.bf16.msra.mxu0 %v861
    %1364 = vmatprep.subr.bf16.mxu0 %v866
    %1365 = vmatpush1.bf16.msra.mxu0 %v865
    %1366 = vmatprep.subr.bf16.mxu0 %v870
    %1367 = vmatpush1.bf16.msra.mxu0 %v869
    %1368 = vmatprep.subr.bf16.mxu0 %v874
    %1369 = vmatpush1.bf16.msra.mxu0 %v873
    %1370 = vmatprep.subr.bf16.mxu0 %v878
    %1371 = vmatpush1.bf16.msra.mxu0 %v877
    %1372 = vmatprep.subr.bf16.mxu0 %v882
    %1373 = vmatpush1.bf16.msra.mxu0 %v881
    %1374 = vmatprep.subr.bf16.mxu0 %v886
    %1375 = vmatpush1.bf16.msra.mxu0 %v885
    %1376 = vmatprep.subr.bf16.mxu0 %v890
    %1377 = vmatpush1.bf16.msra.mxu0 %v889
    %1378 = vmatprep.subr.bf16.mxu0 %v894
    %1379 = vmatpush1.bf16.msra.mxu0 %v893
    %1380 = vmatprep.subr.bf16.mxu0 %v898
    %1381 = vmatpush1.bf16.msra.mxu0 %v897
    %1382 = vmatprep.subr.bf16.mxu0 %v902
    %1383 = vmatpush1.bf16.msra.mxu0 %v901
    %1384 = vmatprep.subr.bf16.mxu0 %v906
    %1385 = vmatpush1.bf16.msra.mxu0 %v905
    %1386 = vmatprep.subr.bf16.mxu0 %v910
    %1387 = vmatpush1.bf16.msra.mxu0 %v909
    %1388 = vmatprep.subr.bf16.mxu0 %v914
    %1389 = vmatpush1.bf16.msra.mxu0 %v913
    %1390 = vmatprep.mubr.bf16.mxu0 %v264
    %1391 = vmatmul.mubr.bf16.gmra.mrb[0].mxu0 %v263
    %v1392 = vpop.f32.mrb[0].mxu0
    %v1393 = vadd.f32 %v245, %v1392
    %v1394 = vpop.f32.mrb[0].mxu0
    %v1395 = vadd.f32 %v249, %v1394
    %v1396 = vpop.f32.mrb[0].mxu0
    %v1397 = vpop.f32.mrb[0].mxu0
    %1398 = vdwg.mxu0
    %1399 = vmatprep.subr.bf16.mxu0 %v918
    %1400 = vmatpush1.bf16.msra.mxu0 %v917
    %1401 = vmatprep.subr.bf16.mxu0 %v922
    %1402 = vmatpush1.bf16.msra.mxu0 %v921
    %1403 = vmatprep.subr.bf16.mxu0 %v926
    %1404 = vmatpush1.bf16.msra.mxu0 %v925
    %1405 = vmatprep.subr.bf16.mxu0 %v930
    %1406 = vmatpush1.bf16.msra.mxu0 %v929
    %1407 = vmatprep.subr.bf16.mxu0 %v934
    %1408 = vmatpush1.bf16.msra.mxu0 %v933
    %1409 = vmatprep.subr.bf16.mxu0 %v938
    %1410 = vmatpush1.bf16.msra.mxu0 %v937
    %1411 = vmatprep.subr.bf16.mxu0 %v942
    %1412 = vmatpush1.bf16.msra.mxu0 %v941
    %1413 = vmatprep.subr.bf16.mxu0 %v946
    %1414 = vmatpush1.bf16.msra.mxu0 %v945
    %1415 = vmatprep.subr.bf16.mxu0 %v950
    %1416 = vmatpush1.bf16.msra.mxu0 %v949
    %1417 = vmatprep.subr.bf16.mxu0 %v954
    %1418 = vmatpush1.bf16.msra.mxu0 %v953
    %1419 = vmatprep.subr.bf16.mxu0 %v958
    %1420 = vmatpush1.bf16.msra.mxu0 %v957
    %1421 = vmatprep.subr.bf16.mxu0 %v962
    %1422 = vmatpush1.bf16.msra.mxu0 %v961
    %1423 = vmatprep.subr.bf16.mxu0 %v966
    %1424 = vmatpush1.bf16.msra.mxu0 %v965
    %1425 = vmatprep.subr.bf16.mxu0 %v970
    %1426 = vmatpush1.bf16.msra.mxu0 %v969
    %1427 = vmatprep.subr.bf16.mxu0 %v974
    %1428 = vmatpush1.bf16.msra.mxu0 %v973
    %1429 = vmatprep.subr.bf16.mxu0 %v978
    %1430 = vmatpush1.bf16.msra.mxu0 %v977
    %1431 = vmatprep.mubr.bf16.mxu0 %v266
    %1432 = vmatmul.mubr.bf16.gmra.mrb[0].mxu0 %v265
    %v1433 = vpop.f32.mrb[0].mxu0
    %v1434 = vadd.f32 %v1393, %v1433
    %v1435 = vpop.f32.mrb[0].mxu0
    %v1436 = vadd.f32 %v1395, %v1435
    %v1437 = vpop.f32.mrb[0].mxu0
    %v1438 = vpop.f32.mrb[0].mxu0
    %1439 = vdwg.mxu0
    %1440 = vmatprep.subr.bf16.mxu0 %v982
    %1441 = vmatpush1.bf16.msra.mxu0 %v981
    %1442 = vmatprep.subr.bf16.mxu0 %v986
    %1443 = vmatpush1.bf16.msra.mxu0 %v985
    %1444 = vmatprep.subr.bf16.mxu0 %v990
    %1445 = vmatpush1.bf16.msra.mxu0 %v989
    %1446 = vmatprep.subr.bf16.mxu0 %v994
    %1447 = vmatpush1.bf16.msra.mxu0 %v993
    %1448 = vmatprep.subr.bf16.mxu0 %v998
    %1449 = vmatpush1.bf16.msra.mxu0 %v997
    %1450 = vmatprep.subr.bf16.mxu0 %v1002
    %1451 = vmatpush1.bf16.msra.mxu0 %v1001
    %1452 = vmatprep.subr.bf16.mxu0 %v1006
    %1453 = vmatpush1.bf16.msra.mxu0 %v1005
    %1454 = vmatprep.subr.bf16.mxu0 %v1010
    %1455 = vmatpush1.bf16.msra.mxu0 %v1009
    %1456 = vmatprep.subr.bf16.mxu0 %v1014
    %1457 = vmatpush1.bf16.msra.mxu0 %v1013
    %1458 = vmatprep.subr.bf16.mxu0 %v1018
    %1459 = vmatpush1.bf16.msra.mxu0 %v1017
    %1460 = vmatprep.subr.bf16.mxu0 %v1022
    %1461 = vmatpush1.bf16.msra.mxu0 %v1021
    %1462 = vmatprep.subr.bf16.mxu0 %v1026
    %1463 = vmatpush1.bf16.msra.mxu0 %v1025
    %1464 = vmatprep.subr.bf16.mxu0 %v1030
    %1465 = vmatpush1.bf16.msra.mxu0 %v1029
    %1466 = vmatprep.subr.bf16.mxu0 %v1034
    %1467 = vmatpush1.bf16.msra.mxu0 %v1033
    %1468 = vmatprep.subr.bf16.mxu0 %v1038
    %1469 = vmatpush1.bf16.msra.mxu0 %v1037
    %1470 = vmatprep.subr.bf16.mxu0 %v1042
    %1471 = vmatpush1.bf16.msra.mxu0 %v1041
    %1472 = vmatprep.mubr.bf16.mxu0 %v268
    %1473 = vmatmul.mubr.bf16.gmra.mrb[0].mxu0 %v267
    %v1474 = vpop.f32.mrb[0].mxu0
    %v1475 = vadd.f32 %v1434, %v1474
    %v1476 = vpop.f32.mrb[0].mxu0
    %v1477 = vadd.f32 %v1436, %v1476
    %v1478 = vpop.f32.mrb[0].mxu0
    %v1479 = vpop.f32.mrb[0].mxu0
    %1480 = vdwg.mxu0
    %v1481 = vmax.f32 %v1352, 0.0
    %v1482 = vmax.f32 %v1354, 0.0
    %v1483 = vmax.f32 %v1475, 0.0
    %v1484 = vmax.f32 %v1477, 0.0
    %v1485 = vpack.c.bf16 %v1481, %v1481
    %v1486 = vpack.c.bf16 %v1482, %v1482
    %v1487 = vpack.c.bf16 %v1483, %v1483
    %v1488 = vpack.c.bf16 %v1484, %v1484
    %v1489 = vld [vmem:[%s3] sm:$0xff]
    %v1490 = vld [vmem:[%s3 + $0x8] sm:$0xff]
    %v1491 = vld [vmem:[%s3 + $0x10] sm:$0xff]
    %v1492 = vld [vmem:[%s3 + $0x18] sm:$0xff]
    %v1493 = vld [vmem:[%s3 + $0x20] sm:$0xff]
    %v1494 = vld [vmem:[%s3 + $0x28] sm:$0xff]
    %v1495 = vld [vmem:[%s3 + $0x30] sm:$0xff]
    %v1496 = vld [vmem:[%s3 + $0x38] sm:$0xff]
    %v1497 = vld [vmem:[%s3 + $0x40] sm:$0xff]
    %v1498 = vld [vmem:[%s3 + $0x48] sm:$0xff]
    %v1499 = vld [vmem:[%s3 + $0x50] sm:$0xff]
    %v1500 = vld [vmem:[%s3 + $0x58] sm:$0xff]
    %v1501 = vld [vmem:[%s3 + $0x60] sm:$0xff]
    %v1502 = vld [vmem:[%s3 + $0x68] sm:$0xff]
    %v1503 = vld [vmem:[%s3 + $0x70] sm:$0xff]
    %v1504 = vld [vmem:[%s3 + $0x78] sm:$0xff]
    %v1505 = vld [vmem:[%s3 + $0x80] sm:$0xff]
    %v1506 = vld [vmem:[%s3 + $0x88] sm:$0xff]
    %v1507 = vld [vmem:[%s3 + $0x90] sm:$0xff]
    %v1508 = vld [vmem:[%s3 + $0x98] sm:$0xff]
    %v1509 = vld [vmem:[%s3 + $0xa0] sm:$0xff]
    %v1510 = vld [vmem:[%s3 + $0xa8] sm:$0xff]
    %v1511 = vld [vmem:[%s3 + $0xb0] sm:$0xff]
    %v1512 = vld [vmem:[%s3 + $0xb8] sm:$0xff]
    %v1513 = vld [vmem:[%s3 + $0xc0] sm:$0xff]
    %v1514 = vld [vmem:[%s3 + $0xc8] sm:$0xff]
    %v1515 = vld [vmem:[%s3 + $0xd0] sm:$0xff]
    %v1516 = vld [vmem:[%s3 + $0xd8] sm:$0xff]
    %v1517 = vld [vmem:[%s3 + $0xe0] sm:$0xff]
    %v1518 = vld [vmem:[%s3 + $0xe8] sm:$0xff]
    %v1519 = vld [vmem:[%s3 + $0xf0] sm:$0xff]
    %v1520 = vld [vmem:[%s3 + $0xf8] sm:$0xff]
    %v1521 = vld [vmem:[%s3 + $0x100] sm:$0xff]
    %v1522 = vld [vmem:[%s3 + $0x108] sm:$0xff]
    %v1523 = vld [vmem:[%s3 + $0x110] sm:$0xff]
    %v1524 = vld [vmem:[%s3 + $0x118] sm:$0xff]
    %v1525 = vld [vmem:[%s3 + $0x120] sm:$0xff]
    %v1526 = vld [vmem:[%s3 + $0x128] sm:$0xff]
    %v1527 = vld [vmem:[%s3 + $0x130] sm:$0xff]
    %v1528 = vld [vmem:[%s3 + $0x138] sm:$0xff]
    %v1529 = vld [vmem:[%s3 + $0x140] sm:$0xff]
    %v1530 = vld [vmem:[%s3 + $0x148] sm:$0xff]
    %v1531 = vld [vmem:[%s3 + $0x150] sm:$0xff]
    %v1532 = vld [vmem:[%s3 + $0x158] sm:$0xff]
    %v1533 = vld [vmem:[%s3 + $0x160] sm:$0xff]
    %v1534 = vld [vmem:[%s3 + $0x168] sm:$0xff]
    %v1535 = vld [vmem:[%s3 + $0x170] sm:$0xff]
    %v1536 = vld [vmem:[%s3 + $0x178] sm:$0xff]
    %v1537 = vld [vmem:[%s3 + $0x180] sm:$0xff]
    %v1538 = vld [vmem:[%s3 + $0x188] sm:$0xff]
    %v1539 = vld [vmem:[%s3 + $0x190] sm:$0xff]
    %v1540 = vld [vmem:[%s3 + $0x198] sm:$0xff]
    %v1541 = vld [vmem:[%s3 + $0x1a0] sm:$0xff]
    %v1542 = vld [vmem:[%s3 + $0x1a8] sm:$0xff]
    %v1543 = vld [vmem:[%s3 + $0x1b0] sm:$0xff]
    %v1544 = vld [vmem:[%s3 + $0x1b8] sm:$0xff]
    %v1545 = vld [vmem:[%s3 + $0x1c0] sm:$0xff]
    %v1546 = vld [vmem:[%s3 + $0x1c8] sm:$0xff]
    %v1547 = vld [vmem:[%s3 + $0x1d0] sm:$0xff]
    %v1548 = vld [vmem:[%s3 + $0x1d8] sm:$0xff]
    %v1549 = vld [vmem:[%s3 + $0x1e0] sm:$0xff]
    %v1550 = vld [vmem:[%s3 + $0x1e8] sm:$0xff]
    %v1551 = vld [vmem:[%s3 + $0x1f0] sm:$0xff]
    %v1552 = vld [vmem:[%s3 + $0x1f8] sm:$0xff]
    %v1553 = vld [vmem:[%s4] sm:$0x3]
    %v1555 = vlaneseq
    %v1556 = vshrl.u32 %v1555, 7
    %v1557 = vsub.s32 0, %v1556
    %v1558 = vrot.slane %v1553, %v1557
    %v1559 = vlaneseq
    %v1560 = vshrl.u32 %v1559, 7
    %v1561 = vsub.s32 1, %v1560
    %v1562 = vrot.slane %v1553, %v1561
    %v1629 = vunpack.c.l.b16 %v1489
    %v1630 = vunpack.c.h.b16 %v1489
    %v1631 = vunpack.c.l.b16 %v1490
    %v1632 = vunpack.c.h.b16 %v1490
    %v1633 = vunpack.c.l.b16 %v1491
    %v1634 = vunpack.c.h.b16 %v1491
    %v1635 = vunpack.c.l.b16 %v1492
    %v1636 = vunpack.c.h.b16 %v1492
    %v1637 = vunpack.c.l.b16 %v1493
    %v1638 = vunpack.c.h.b16 %v1493
    %v1639 = vunpack.c.l.b16 %v1494
    %v1640 = vunpack.c.h.b16 %v1494
    %v1641 = vunpack.c.l.b16 %v1495
    %v1642 = vunpack.c.h.b16 %v1495
    %v1643 = vunpack.c.l.b16 %v1496
    %v1644 = vunpack.c.h.b16 %v1496
    %v1645 = vunpack.c.l.b16 %v1497
    %v1646 = vunpack.c.h.b16 %v1497
    %v1647 = vunpack.c.l.b16 %v1498
    %v1648 = vunpack.c.h.b16 %v1498
    %v1649 = vunpack.c.l.b16 %v1499
    %v1650 = vunpack.c.h.b16 %v1499
    %v1651 = vunpack.c.l.b16 %v1500
    %v1652 = vunpack.c.h.b16 %v1500
    %v1653 = vunpack.c.l.b16 %v1501
    %v1654 = vunpack.c.h.b16 %v1501
    %v1655 = vunpack.c.l.b16 %v1502
    %v1656 = vunpack.c.h.b16 %v1502
    %v1657 = vunpack.c.l.b16 %v1503
    %v1658 = vunpack.c.h.b16 %v1503
    %v1659 = vunpack.c.l.b16 %v1504
    %v1660 = vunpack.c.h.b16 %v1504
    %v1661 = vunpack.c.l.b16 %v1505
    %v1662 = vunpack.c.h.b16 %v1505
    %v1663 = vunpack.c.l.b16 %v1506
    %v1664 = vunpack.c.h.b16 %v1506
    %v1665 = vunpack.c.l.b16 %v1507
    %v1666 = vunpack.c.h.b16 %v1507
    %v1667 = vunpack.c.l.b16 %v1508
    %v1668 = vunpack.c.h.b16 %v1508
    %v1669 = vunpack.c.l.b16 %v1509
    %v1670 = vunpack.c.h.b16 %v1509
    %v1671 = vunpack.c.l.b16 %v1510
    %v1672 = vunpack.c.h.b16 %v1510
    %v1673 = vunpack.c.l.b16 %v1511
    %v1674 = vunpack.c.h.b16 %v1511
    %v1675 = vunpack.c.l.b16 %v1512
    %v1676 = vunpack.c.h.b16 %v1512
    %v1677 = vunpack.c.l.b16 %v1513
    %v1678 = vunpack.c.h.b16 %v1513
    %v1679 = vunpack.c.l.b16 %v1514
    %v1680 = vunpack.c.h.b16 %v1514
    %v1681 = vunpack.c.l.b16 %v1515
    %v1682 = vunpack.c.h.b16 %v1515
    %v1683 = vunpack.c.l.b16 %v1516
    %v1684 = vunpack.c.h.b16 %v1516
    %v1685 = vunpack.c.l.b16 %v1517
    %v1686 = vunpack.c.h.b16 %v1517
    %v1687 = vunpack.c.l.b16 %v1518
    %v1688 = vunpack.c.h.b16 %v1518
    %v1689 = vunpack.c.l.b16 %v1519
    %v1690 = vunpack.c.h.b16 %v1519
    %v1691 = vunpack.c.l.b16 %v1520
    %v1692 = vunpack.c.h.b16 %v1520
    %v1693 = vunpack.c.l.b16 %v1521
    %v1694 = vunpack.c.h.b16 %v1521
    %v1695 = vunpack.c.l.b16 %v1522
    %v1696 = vunpack.c.h.b16 %v1522
    %v1697 = vunpack.c.l.b16 %v1523
    %v1698 = vunpack.c.h.b16 %v1523
    %v1699 = vunpack.c.l.b16 %v1524
    %v1700 = vunpack.c.h.b16 %v1524
    %v1701 = vunpack.c.l.b16 %v1525
    %v1702 = vunpack.c.h.b16 %v1525
    %v1703 = vunpack.c.l.b16 %v1526
    %v1704 = vunpack.c.h.b16 %v1526
    %v1705 = vunpack.c.l.b16 %v1527
    %v1706 = vunpack.c.h.b16 %v1527
    %v1707 = vunpack.c.l.b16 %v1528
    %v1708 = vunpack.c.h.b16 %v1528
    %v1709 = vunpack.c.l.b16 %v1529
    %v1710 = vunpack.c.h.b16 %v1529
    %v1711 = vunpack.c.l.b16 %v1530
    %v1712 = vunpack.c.h.b16 %v1530
    %v1713 = vunpack.c.l.b16 %v1531
    %v1714 = vunpack.c.h.b16 %v1531
    %v1715 = vunpack.c.l.b16 %v1532
    %v1716 = vunpack.c.h.b16 %v1532
    %v1717 = vunpack.c.l.b16 %v1533
    %v1718 = vunpack.c.h.b16 %v1533
    %v1719 = vunpack.c.l.b16 %v1534
    %v1720 = vunpack.c.h.b16 %v1534
    %v1721 = vunpack.c.l.b16 %v1535
    %v1722 = vunpack.c.h.b16 %v1535
    %v1723 = vunpack.c.l.b16 %v1536
    %v1724 = vunpack.c.h.b16 %v1536
    %v1725 = vunpack.c.l.b16 %v1537
    %v1726 = vunpack.c.h.b16 %v1537
    %v1727 = vunpack.c.l.b16 %v1538
    %v1728 = vunpack.c.h.b16 %v1538
    %v1729 = vunpack.c.l.b16 %v1539
    %v1730 = vunpack.c.h.b16 %v1539
    %v1731 = vunpack.c.l.b16 %v1540
    %v1732 = vunpack.c.h.b16 %v1540
    %v1733 = vunpack.c.l.b16 %v1541
    %v1734 = vunpack.c.h.b16 %v1541
    %v1735 = vunpack.c.l.b16 %v1542
    %v1736 = vunpack.c.h.b16 %v1542
    %v1737 = vunpack.c.l.b16 %v1543
    %v1738 = vunpack.c.h.b16 %v1543
    %v1739 = vunpack.c.l.b16 %v1544
    %v1740 = vunpack.c.h.b16 %v1544
    %v1741 = vunpack.c.l.b16 %v1545
    %v1742 = vunpack.c.h.b16 %v1545
    %v1743 = vunpack.c.l.b16 %v1546
    %v1744 = vunpack.c.h.b16 %v1546
    %v1745 = vunpack.c.l.b16 %v1547
    %v1746 = vunpack.c.h.b16 %v1547
    %v1747 = vunpack.c.l.b16 %v1548
    %v1748 = vunpack.c.h.b16 %v1548
    %v1749 = vunpack.c.l.b16 %v1549
    %v1750 = vunpack.c.h.b16 %v1549
    %v1751 = vunpack.c.l.b16 %v1550
    %v1752 = vunpack.c.h.b16 %v1550
    %v1753 = vunpack.c.l.b16 %v1551
    %v1754 = vunpack.c.h.b16 %v1551
    %v1755 = vunpack.c.l.b16 %v1552
    %v1756 = vunpack.c.h.b16 %v1552
    %v1757 = vpack.c.b16 %v1631, %v1629
    %v1758 = vpack.c.b16 %v1632, %v1630
    %v1759 = vpack.c.b16 %v1635, %v1633
    %v1760 = vpack.c.b16 %v1636, %v1634
    %v1761 = vpack.c.b16 %v1639, %v1637
    %v1762 = vpack.c.b16 %v1640, %v1638
    %v1763 = vpack.c.b16 %v1643, %v1641
    %v1764 = vpack.c.b16 %v1644, %v1642
    %v1765 = vpack.c.b16 %v1647, %v1645
    %v1766 = vpack.c.b16 %v1648, %v1646
    %v1767 = vpack.c.b16 %v1651, %v1649
    %v1768 = vpack.c.b16 %v1652, %v1650
    %v1769 = vpack.c.b16 %v1655, %v1653
    %v1770 = vpack.c.b16 %v1656, %v1654
    %v1771 = vpack.c.b16 %v1659, %v1657
    %v1772 = vpack.c.b16 %v1660, %v1658
    %v1773 = vpack.c.b16 %v1663, %v1661
    %v1774 = vpack.c.b16 %v1664, %v1662
    %v1775 = vpack.c.b16 %v1667, %v1665
    %v1776 = vpack.c.b16 %v1668, %v1666
    %v1777 = vpack.c.b16 %v1671, %v1669
    %v1778 = vpack.c.b16 %v1672, %v1670
    %v1779 = vpack.c.b16 %v1675, %v1673
    %v1780 = vpack.c.b16 %v1676, %v1674
    %v1781 = vpack.c.b16 %v1679, %v1677
    %v1782 = vpack.c.b16 %v1680, %v1678
    %v1783 = vpack.c.b16 %v1683, %v1681
    %v1784 = vpack.c.b16 %v1684, %v1682
    %v1785 = vpack.c.b16 %v1687, %v1685
    %v1786 = vpack.c.b16 %v1688, %v1686
    %v1787 = vpack.c.b16 %v1691, %v1689
    %v1788 = vpack.c.b16 %v1692, %v1690
    %v1789 = vpack.c.b16 %v1695, %v1693
    %v1790 = vpack.c.b16 %v1696, %v1694
    %v1791 = vpack.c.b16 %v1699, %v1697
    %v1792 = vpack.c.b16 %v1700, %v1698
    %v1793 = vpack.c.b16 %v1703, %v1701
    %v1794 = vpack.c.b16 %v1704, %v1702
    %v1795 = vpack.c.b16 %v1707, %v1705
    %v1796 = vpack.c.b16 %v1708, %v1706
    %v1797 = vpack.c.b16 %v1711, %v1709
    %v1798 = vpack.c.b16 %v1712, %v1710
    %v1799 = vpack.c.b16 %v1715, %v1713
    %v1800 = vpack.c.b16 %v1716, %v1714
    %v1801 = vpack.c.b16 %v1719, %v1717
    %v1802 = vpack.c.b16 %v1720, %v1718
    %v1803 = vpack.c.b16 %v1723, %v1721
    %v1804 = vpack.c.b16 %v1724, %v1722
    %v1805 = vpack.c.b16 %v1727, %v1725
    %v1806 = vpack.c.b16 %v1728, %v1726
    %v1807 = vpack.c.b16 %v1731, %v1729
    %v1808 = vpack.c.b16 %v1732, %v1730
    %v1809 = vpack.c.b16 %v1735, %v1733
    %v1810 = vpack.c.b16 %v1736, %v1734
    %v1811 = vpack.c.b16 %v1739, %v1737
    %v1812 = vpack.c.b16 %v1740, %v1738
    %v1813 = vpack.c.b16 %v1743, %v1741
    %v1814 = vpack.c.b16 %v1744, %v1742
    %v1815 = vpack.c.b16 %v1747, %v1745
    %v1816 = vpack.c.b16 %v1748, %v1746
    %v1817 = vpack.c.b16 %v1751, %v1749
    %v1818 = vpack.c.b16 %v1752, %v1750
    %v1819 = vpack.c.b16 %v1755, %v1753
    %v1820 = vpack.c.b16 %v1756, %v1754
    %1885 = vmatprep.subr.bf16.mxu0 %v1758
    %1886 = vmatpush1.bf16.msra.mxu0 %v1757
    %1887 = vmatprep.subr.bf16.mxu0 %v1760
    %1888 = vmatpush1.bf16.msra.mxu0 %v1759
    %1889 = vmatprep.subr.bf16.mxu0 %v1762
    %1890 = vmatpush1.bf16.msra.mxu0 %v1761
    %1891 = vmatprep.subr.bf16.mxu0 %v1764
    %1892 = vmatpush1.bf16.msra.mxu0 %v1763
    %1893 = vmatprep.subr.bf16.mxu0 %v1766
    %1894 = vmatpush1.bf16.msra.mxu0 %v1765
    %1895 = vmatprep.subr.bf16.mxu0 %v1768
    %1896 = vmatpush1.bf16.msra.mxu0 %v1767
    %1897 = vmatprep.subr.bf16.mxu0 %v1770
    %1898 = vmatpush1.bf16.msra.mxu0 %v1769
    %1899 = vmatprep.subr.bf16.mxu0 %v1772
    %1900 = vmatpush1.bf16.msra.mxu0 %v1771
    %1901 = vmatprep.subr.bf16.mxu0 %v1774
    %1902 = vmatpush1.bf16.msra.mxu0 %v1773
    %1903 = vmatprep.subr.bf16.mxu0 %v1776
    %1904 = vmatpush1.bf16.msra.mxu0 %v1775
    %1905 = vmatprep.subr.bf16.mxu0 %v1778
    %1906 = vmatpush1.bf16.msra.mxu0 %v1777
    %1907 = vmatprep.subr.bf16.mxu0 %v1780
    %1908 = vmatpush1.bf16.msra.mxu0 %v1779
    %1909 = vmatprep.subr.bf16.mxu0 %v1782
    %1910 = vmatpush1.bf16.msra.mxu0 %v1781
    %1911 = vmatprep.subr.bf16.mxu0 %v1784
    %1912 = vmatpush1.bf16.msra.mxu0 %v1783
    %1913 = vmatprep.subr.bf16.mxu0 %v1786
    %1914 = vmatpush1.bf16.msra.mxu0 %v1785
    %1915 = vmatprep.subr.bf16.mxu0 %v1788
    %1916 = vmatpush1.bf16.msra.mxu0 %v1787
    %1917 = vmatprep.mubr.bf16.mxu0 %v1486
    %1918 = vmatmul.mubr.bf16.gmra.mrb[0].mxu0 %v1485
    %v1919 = vpop.f32.mrb[0].mxu0
    %v1920 = vadd.f32 %v1558, %v1919
    %v1921 = vpop.f32.mrb[0].mxu0
    %v1922 = vadd.f32 %v1562, %v1921
    %v1923 = vpop.f32.mrb[0].mxu0
    %v1924 = vpop.f32.mrb[0].mxu0
    %1925 = vdwg.mxu0
    %1926 = vmatprep.subr.bf16.mxu0 %v1790
    %1927 = vmatpush1.bf16.msra.mxu0 %v1789
    %1928 = vmatprep.subr.bf16.mxu0 %v1792
    %1929 = vmatpush1.bf16.msra.mxu0 %v1791
    %1930 = vmatprep.subr.bf16.mxu0 %v1794
    %1931 = vmatpush1.bf16.msra.mxu0 %v1793
    %1932 = vmatprep.subr.bf16.mxu0 %v1796
    %1933 = vmatpush1.bf16.msra.mxu0 %v1795
    %1934 = vmatprep.subr.bf16.mxu0 %v1798
    %1935 = vmatpush1.bf16.msra.mxu0 %v1797
    %1936 = vmatprep.subr.bf16.mxu0 %v1800
    %1937 = vmatpush1.bf16.msra.mxu0 %v1799
    %1938 = vmatprep.subr.bf16.mxu0 %v1802
    %1939 = vmatpush1.bf16.msra.mxu0 %v1801
    %1940 = vmatprep.subr.bf16.mxu0 %v1804
    %1941 = vmatpush1.bf16.msra.mxu0 %v1803
    %1942 = vmatprep.subr.bf16.mxu0 %v1806
    %1943 = vmatpush1.bf16.msra.mxu0 %v1805
    %1944 = vmatprep.subr.bf16.mxu0 %v1808
    %1945 = vmatpush1.bf16.msra.mxu0 %v1807
    %1946 = vmatprep.subr.bf16.mxu0 %v1810
    %1947 = vmatpush1.bf16.msra.mxu0 %v1809
    %1948 = vmatprep.subr.bf16.mxu0 %v1812
    %1949 = vmatpush1.bf16.msra.mxu0 %v1811
    %1950 = vmatprep.subr.bf16.mxu0 %v1814
    %1951 = vmatpush1.bf16.msra.mxu0 %v1813
    %1952 = vmatprep.subr.bf16.mxu0 %v1816
    %1953 = vmatpush1.bf16.msra.mxu0 %v1815
    %1954 = vmatprep.subr.bf16.mxu0 %v1818
    %1955 = vmatpush1.bf16.msra.mxu0 %v1817
    %1956 = vmatprep.subr.bf16.mxu0 %v1820
    %1957 = vmatpush1.bf16.msra.mxu0 %v1819
    %1958 = vmatprep.mubr.bf16.mxu0 %v1488
    %1959 = vmatmul.mubr.bf16.gmra.mrb[0].mxu0 %v1487
    %v1960 = vpop.f32.mrb[0].mxu0
    %v1961 = vadd.f32 %v1920, %v1960
    %v1962 = vpop.f32.mrb[0].mxu0
    %v1963 = vadd.f32 %v1922, %v1962
    %v1964 = vpop.f32.mrb[0].mxu0
    %v1965 = vpop.f32.mrb[0].mxu0
    %1966 = vdwg.mxu0
    %v1967 = vmax.f32 %v1961, 0.0
    %v1968 = vmax.f32 %v1963, 0.0
    %v1969 = vpack.c.bf16 %v1967, %v1967
    %v1970 = vpack.c.bf16 %v1968, %v1968
    %v1971 = vld [vmem:[%s5] sm:$0xf]
    %v1972 = vld [vmem:[%s5 + $0x4] sm:$0xf]
    %v1973 = vld [vmem:[%s5 + $0x8] sm:$0xf]
    %v1974 = vld [vmem:[%s5 + $0xc] sm:$0xf]
    %v1975 = vld [vmem:[%s5 + $0x10] sm:$0xf]
    %v1976 = vld [vmem:[%s5 + $0x14] sm:$0xf]
    %v1977 = vld [vmem:[%s5 + $0x18] sm:$0xf]
    %v1978 = vld [vmem:[%s5 + $0x1c] sm:$0xf]
    %v1979 = vld [vmem:[%s5 + $0x20] sm:$0xf]
    %v1980 = vld [vmem:[%s5 + $0x24] sm:$0xf]
    %v1981 = vld [vmem:[%s5 + $0x28] sm:$0xf]
    %v1982 = vld [vmem:[%s5 + $0x2c] sm:$0xf]
    %v1983 = vld [vmem:[%s5 + $0x30] sm:$0xf]
    %v1984 = vld [vmem:[%s5 + $0x34] sm:$0xf]
    %v1985 = vld [vmem:[%s5 + $0x38] sm:$0xf]
    %v1986 = vld [vmem:[%s5 + $0x3c] sm:$0xf]
    %v1987 = vld [vmem:[%s5 + $0x40] sm:$0xf]
    %v1988 = vld [vmem:[%s5 + $0x44] sm:$0xf]
    %v1989 = vld [vmem:[%s5 + $0x48] sm:$0xf]
    %v1990 = vld [vmem:[%s5 + $0x4c] sm:$0xf]
    %v1991 = vld [vmem:[%s5 + $0x50] sm:$0xf]
    %v1992 = vld [vmem:[%s5 + $0x54] sm:$0xf]
    %v1993 = vld [vmem:[%s5 + $0x58] sm:$0xf]
    %v1994 = vld [vmem:[%s5 + $0x5c] sm:$0xf]
    %v1995 = vld [vmem:[%s5 + $0x60] sm:$0xf]
    %v1996 = vld [vmem:[%s5 + $0x64] sm:$0xf]
    %v1997 = vld [vmem:[%s5 + $0x68] sm:$0xf]
    %v1998 = vld [vmem:[%s5 + $0x6c] sm:$0xf]
    %v1999 = vld [vmem:[%s5 + $0x70] sm:$0xf]
    %v2000 = vld [vmem:[%s5 + $0x74] sm:$0xf]
    %v2001 = vld [vmem:[%s5 + $0x78] sm:$0xf]
    %v2002 = vld [vmem:[%s5 + $0x7c] sm:$0xf]
    %v2003 = vld [vmem:[%s6] sm:$0x1]
    %v2005 = vlaneseq
    %v2006 = vshrl.u32 %v2005, 7
    %v2007 = vsub.s32 0, %v2006
    %v2008 = vrot.slane %v2003, %v2007
    %v2042 = vunpack.c.l.b16 %v1971
    %v2043 = vunpack.c.l.b16 %v1972
    %v2044 = vunpack.c.l.b16 %v1973
    %v2045 = vunpack.c.l.b16 %v1974
    %v2046 = vunpack.c.l.b16 %v1975
    %v2047 = vunpack.c.l.b16 %v1976
    %v2048 = vunpack.c.l.b16 %v1977
    %v2049 = vunpack.c.l.b16 %v1978
    %v2050 = vunpack.c.l.b16 %v1979
    %v2051 = vunpack.c.l.b16 %v1980
    %v2052 = vunpack.c.l.b16 %v1981
    %v2053 = vunpack.c.l.b16 %v1982
    %v2054 = vunpack.c.l.b16 %v1983
    %v2055 = vunpack.c.l.b16 %v1984
    %v2056 = vunpack.c.l.b16 %v1985
    %v2057 = vunpack.c.l.b16 %v1986
    %v2058 = vunpack.c.l.b16 %v1987
    %v2059 = vunpack.c.l.b16 %v1988
    %v2060 = vunpack.c.l.b16 %v1989
    %v2061 = vunpack.c.l.b16 %v1990
    %v2062 = vunpack.c.l.b16 %v1991
    %v2063 = vunpack.c.l.b16 %v1992
    %v2064 = vunpack.c.l.b16 %v1993
    %v2065 = vunpack.c.l.b16 %v1994
    %v2066 = vunpack.c.l.b16 %v1995
    %v2067 = vunpack.c.l.b16 %v1996
    %v2068 = vunpack.c.l.b16 %v1997
    %v2069 = vunpack.c.l.b16 %v1998
    %v2070 = vunpack.c.l.b16 %v1999
    %v2071 = vunpack.c.l.b16 %v2000
    %v2072 = vunpack.c.l.b16 %v2001
    %v2073 = vunpack.c.l.b16 %v2002
    %v2074 = vpack.c.b16 %v2043, %v2042
    %v2075 = vpack.c.b16 %v2045, %v2044
    %v2076 = vpack.c.b16 %v2047, %v2046
    %v2077 = vpack.c.b16 %v2049, %v2048
    %v2078 = vpack.c.b16 %v2051, %v2050
    %v2079 = vpack.c.b16 %v2053, %v2052
    %v2080 = vpack.c.b16 %v2055, %v2054
    %v2081 = vpack.c.b16 %v2057, %v2056
    %v2082 = vpack.c.b16 %v2059, %v2058
    %v2083 = vpack.c.b16 %v2061, %v2060
    %v2084 = vpack.c.b16 %v2063, %v2062
    %v2085 = vpack.c.b16 %v2065, %v2064
    %v2086 = vpack.c.b16 %v2067, %v2066
    %v2087 = vpack.c.b16 %v2069, %v2068
    %v2088 = vpack.c.b16 %v2071, %v2070
    %v2089 = vpack.c.b16 %v2073, %v2072
    %2106 = vmatprep.subr.bf16.mxu0 0
    %2107 = vmatpush1.bf16.msra.mxu0 %v2074
    %2108 = vmatprep.subr.bf16.mxu0 0
    %2109 = vmatpush1.bf16.msra.mxu0 %v2075
    %2110 = vmatprep.subr.bf16.mxu0 0
    %2111 = vmatpush1.bf16.msra.mxu0 %v2076
    %2112 = vmatprep.subr.bf16.mxu0 0
    %2113 = vmatpush1.bf16.msra.mxu0 %v2077
    %2114 = vmatprep.subr.bf16.mxu0 0
    %2115 = vmatpush1.bf16.msra.mxu0 %v2078
    %2116 = vmatprep.subr.bf16.mxu0 0
    %2117 = vmatpush1.bf16.msra.mxu0 %v2079
    %2118 = vmatprep.subr.bf16.mxu0 0
    %2119 = vmatpush1.bf16.msra.mxu0 %v2080
    %2120 = vmatprep.subr.bf16.mxu0 0
    %2121 = vmatpush1.bf16.msra.mxu0 %v2081
    %2122 = vmatprep.subr.bf16.mxu0 0
    %2123 = vmatpush1.bf16.msra.mxu0 %v2082
    %2124 = vmatprep.subr.bf16.mxu0 0
    %2125 = vmatpush1.bf16.msra.mxu0 %v2083
    %2126 = vmatprep.subr.bf16.mxu0 0
    %2127 = vmatpush1.bf16.msra.mxu0 %v2084
    %2128 = vmatprep.subr.bf16.mxu0 0
    %2129 = vmatpush1.bf16.msra.mxu0 %v2085
    %2130 = vmatprep.subr.bf16.mxu0 0
    %2131 = vmatpush1.bf16.msra.mxu0 %v2086
    %2132 = vmatprep.subr.bf16.mxu0 0
    %2133 = vmatpush1.bf16.msra.mxu0 %v2087
    %2134 = vmatprep.subr.bf16.mxu0 0
    %2135 = vmatpush1.bf16.msra.mxu0 %v2088
    %2136 = vmatprep.subr.bf16.mxu0 0
    %2137 = vmatpush1.bf16.msra.mxu0 %v2089
    %2138 = vmatprep.mubr.bf16.mxu0 %v1970
    %2139 = vmatmul.mubr.bf16.gmra.mrb[0].mxu0 %v1969
    %v2140 = vpop.f32.mrb[0].mxu0
    %v2141 = vadd.f32 %v2008, %v2140
    %v2142 = vpop.f32.mrb[0].mxu0
    %v2143 = vpop.f32.mrb[0].mxu0
    %v2144 = vpop.f32.mrb[0].mxu0
    %2145 = vdwg.mxu0
    %v2146 = vmax.f32 %v2141, 0.0
    %v2147 = vpack.c.bf16 %v2146, %v2146
    %v2148 = vld [vmem:[%s7] sm:$0xf]
    %v2149 = vld [vmem:[%s7 + $0x4] sm:$0xf]
    %v2150 = vld [vmem:[%s7 + $0x8] sm:$0xf]
    %v2151 = vld [vmem:[%s7 + $0xc] sm:$0xf]
    %v2152 = vld [vmem:[%s7 + $0x10] sm:$0xf]
    %v2153 = vld [vmem:[%s7 + $0x14] sm:$0xf]
    %v2154 = vld [vmem:[%s7 + $0x18] sm:$0xf]
    %v2155 = vld [vmem:[%s7 + $0x1c] sm:$0xf]
    %v2156 = vld [vmem:[%s7 + $0x20] sm:$0xf]
    %v2157 = vld [vmem:[%s7 + $0x24] sm:$0xf]
    %v2158 = vld [vmem:[%s7 + $0x28] sm:$0xf]
    %v2159 = vld [vmem:[%s7 + $0x2c] sm:$0xf]
    %v2160 = vld [vmem:[%s7 + $0x30] sm:$0xf]
    %v2161 = vld [vmem:[%s7 + $0x34] sm:$0xf]
    %v2162 = vld [vmem:[%s7 + $0x38] sm:$0xf]
    %v2163 = vld [vmem:[%s7 + $0x3c] sm:$0xf]
    %v2164 = vld [vmem:[%s8] sm:$0x1]
    %v2166 = vlaneseq
    %v2167 = vshrl.u32 %v2166, 7
    %v2168 = vsub.s32 0, %v2167
    %v2169 = vrot.slane %v2164, %v2168
    %v2187 = vunpack.c.l.b16 %v2148
    %v2188 = vunpack.c.l.b16 %v2149
    %v2189 = vunpack.c.l.b16 %v2150
    %v2190 = vunpack.c.l.b16 %v2151
    %v2191 = vunpack.c.l.b16 %v2152
    %v2192 = vunpack.c.l.b16 %v2153
    %v2193 = vunpack.c.l.b16 %v2154
    %v2194 = vunpack.c.l.b16 %v2155
    %v2195 = vunpack.c.l.b16 %v2156
    %v2196 = vunpack.c.l.b16 %v2157
    %v2197 = vunpack.c.l.b16 %v2158
    %v2198 = vunpack.c.l.b16 %v2159
    %v2199 = vunpack.c.l.b16 %v2160
    %v2200 = vunpack.c.l.b16 %v2161
    %v2201 = vunpack.c.l.b16 %v2162
    %v2202 = vunpack.c.l.b16 %v2163
    %v2203 = vpack.c.b16 %v2188, %v2187
    %v2204 = vpack.c.b16 %v2190, %v2189
    %v2205 = vpack.c.b16 %v2192, %v2191
    %v2206 = vpack.c.b16 %v2194, %v2193
    %v2207 = vpack.c.b16 %v2196, %v2195
    %v2208 = vpack.c.b16 %v2198, %v2197
    %v2209 = vpack.c.b16 %v2200, %v2199
    %v2210 = vpack.c.b16 %v2202, %v2201
    %2219 = vmatprep.subr.bf16.mxu0 0
    %2220 = vmatpush1.bf16.msra.mxu0 %v2203
    %2221 = vmatprep.subr.bf16.mxu0 0
    %2222 = vmatpush1.bf16.msra.mxu0 %v2204
    %2223 = vmatprep.subr.bf16.mxu0 0
    %2224 = vmatpush1.bf16.msra.mxu0 %v2205
    %2225 = vmatprep.subr.bf16.mxu0 0
    %2226 = vmatpush1.bf16.msra.mxu0 %v2206
    %2227 = vmatprep.subr.bf16.mxu0 0
    %2228 = vmatpush1.bf16.msra.mxu0 %v2207
    %2229 = vmatprep.subr.bf16.mxu0 0
    %2230 = vmatpush1.bf16.msra.mxu0 %v2208
    %2231 = vmatprep.subr.bf16.mxu0 0
    %2232 = vmatpush1.bf16.msra.mxu0 %v2209
    %2233 = vmatprep.subr.bf16.mxu0 0
    %2234 = vmatpush1.bf16.msra.mxu0 %v2210
    %2235 = vmatprep.subr.bf16.mxu0 0
    %2236 = vmatpush1.bf16.msra.mxu0 0
    %2237 = vmatprep.subr.bf16.mxu0 0
    %2238 = vmatpush1.bf16.msra.mxu0 0
    %2239 = vmatprep.subr.bf16.mxu0 0
    %2240 = vmatpush1.bf16.msra.mxu0 0
    %2241 = vmatprep.subr.bf16.mxu0 0
    %2242 = vmatpush1.bf16.msra.mxu0 0
    %2243 = vmatprep.subr.bf16.mxu0 0
    %2244 = vmatpush1.bf16.msra.mxu0 0
    %2245 = vmatprep.subr.bf16.mxu0 0
    %2246 = vmatpush1.bf16.msra.mxu0 0
    %2247 = vmatprep.subr.bf16.mxu0 0
    %2248 = vmatpush1.bf16.msra.mxu0 0
    %2249 = vmatprep.subr.bf16.mxu0 0
    %2250 = vmatpush1.bf16.msra.mxu0 0
    %2251 = vmatprep.mubr.bf16.mxu0 0
    %2252 = vmatmul.mubr.bf16.gmra.mrb[0].mxu0 %v2147
    %v2253 = vpop.f32.mrb[0].mxu0
    %v2254 = vadd.f32 %v2169, %v2253
    %v2255 = vpop.f32.mrb[0].mxu0
    %v2256 = vpop.f32.mrb[0].mxu0
    %v2257 = vpop.f32.mrb[0].mxu0
    %2258 = vdwg.mxu0
    %2259 = vst [vmem:[#allocation2] sm:$0xff] %v2254
    %v2260 = vlaneseq
    %v2261 = vand.u32 %v2260, 127
    %vm2262 = vcmp.lt.s32.totalorder %v2261, 10
    %v2263 = vsel %vm2262, %v2254, -inf
    %2264 = vmax.xlane.f32.xlu0 %v2263
    %v2265 = vpop.xlane.xlu0 %2264
    %v2266 = vsub.f32 %v2263, %v2265
    %v2267 = vmul.f32 %v2266, 1.442695
    %v2268 = vpow.pop %v2267
    %2269 = vadd.xlane.f32.xlu0 %v2268
    %v2270 = vpop.xlane.xlu0 %2269
    %v2271 = vrcp.pop %v2270
    %v2272 = vmul.f32 %v2268, %v2271
    %2273 = vst [vmem:[#allocation4] sm:$0xff] %v2272
    // Predicated region
    $region38: #{convnet_forward.1} parent=1 // pred_check
      _
    $region39: #{convnet_forward.1} parent=1 // pred_check_branch
      %2275 = sbr.rel (0) target = $region41
    $region40: #{convnet_forward.1} parent=1 // pred_region
      %s2277 = ssub.s32 128, 128
      %2278 = vsyncadd [#allocation3], %s2277
      %s2280 = sshll.u32 [#allocation2], 4
      %s2281 = int_to_ptr.vmem [resolvable:$true] %s2280
      %2283 = dma.vmem_to_hbm [thread:$0]  %s2281, 128, %s9, [#allocation3]
    $region41: #{convnet_forward.1} parent=1 // pred_fallthru
      _
    // Predicated region
    $region42: #{convnet_forward.1} parent=1 // pred_check
      _
    $region43: #{convnet_forward.1} parent=1 // pred_check_branch
      %2285 = sbr.rel (0) target = $region45
    $region44: #{convnet_forward.1} parent=1 // pred_region
      %s2287 = ssub.s32 128, 128
      %2288 = vsyncadd [#allocation5], %s2287
      %s2290 = sshll.u32 [#allocation4], 4
      %s2291 = int_to_ptr.vmem [resolvable:$true] %s2290
      %2293 = dma.vmem_to_hbm [thread:$0]  %s2291, 128, %s10, [#allocation5]
    $region45: #{convnet_forward.1} parent=1 // pred_fallthru
      _
    // Predicated region
    $region46: #{convnet_forward.1} parent=1 // pred_check
      _
    $region47: #{convnet_forward.1} parent=1 // pred_check_branch
      %2295 = sbr.rel (0) target = $region49
    $region48: #{convnet_forward.1} parent=1 // pred_region
      %2296 = dma.done [#allocation3], 128
    $region49: #{convnet_forward.1} parent=1 // pred_fallthru
      _
    // Predicated region
    $region50: #{convnet_forward.1} parent=1 // pred_check
      _
    $region51: #{convnet_forward.1} parent=1 // pred_check_branch
      %2298 = sbr.rel (0) target = $region53
    $region52: #{convnet_forward.1} parent=1 // pred_region
      %2299 = dma.done [#allocation5], 128
    $region53: #{convnet_forward.1} parent=1 // pred_fallthru
      _
    %2300 = vsyncpa [#allocation3], 1
    %2301 = vsyncpa [#allocation5], 1

</llo_original>
